<compile_context>
chip_gen: v6e
topology: v6e:2x2x1
jax: 0.10.0
libtpu: 0.0.40
codegen_flags: <defaults>
</compile_context>

<pallas_src>
import functools

import jax
import jax.numpy as jnp
from jax import lax
from jax.experimental import pallas as pl
from jax.experimental.pallas import tpu as pltpu

LANE = 128
EPS = 1e-5   # nn.LayerNorm default


# ----------------------------------------------------------------------------
# small helpers
# ----------------------------------------------------------------------------
def _round_up(n, m):
    return -(-n // m) * m


def _token_tiling(n_tokens, max_tn=512):
    """Token-tile size (multiple of 16) and number of tiles along N.

    - No row padding: the last tile may be ragged (Pallas masks boundary
      loads/stores), so there is no round_up(rows, tile) 2x blow-up.
    - Tiles are balanced so the last tile is nearly full.
    - Single-tile case uses the full extent (always layout-legal, even when
      n_tokens is not 8/16 aligned).
    """
    n_tiles = pl.cdiv(n_tokens, max_tn)
    if n_tiles <= 1:
        return n_tokens, 1
    tn = _round_up(pl.cdiv(n_tokens, n_tiles), 16)
    return tn, pl.cdiv(n_tokens, tn)


def _vmem_limit_bytes(tile_bytes, weight_bytes):
    """Per-generation VMEM budget: double-buffered row tiles + weights (once,
    they are single-buffered) + headroom, capped at 75% of physical VMEM."""
    try:
        cap = int(pltpu.get_tpu_info().vmem_capacity_bytes)
    except Exception:  # pragma: no cover - conservative (v7x-safe) fallback
        cap = 64 << 20
    need = 2 * tile_bytes + weight_bytes + (6 << 20)
    return int(min(max(need, 16 << 20), (cap * 3) // 4))


def _resident_spec(shape):
    """Constant-index, single-buffered BlockSpec for a VMEM-resident weight."""
    return pl.BlockSpec(shape, lambda *_: (0,) * len(shape),
                        pipeline_mode=pl.Buffered(1))


# ----------------------------------------------------------------------------
# fused MAE kernel
# ----------------------------------------------------------------------------
def _layer_norm_true_d(x, gamma, beta, inv_d):
    # x has zeros in padded lanes, so lane-sums * inv_d give statistics over
    # the TRUE embedding dim.  gamma/beta are zero-padded -> padded lanes stay
    # exactly zero.
    mu = jnp.sum(x, axis=-1, keepdims=True) * inv_d
    ex2 = jnp.sum(x * x, axis=-1, keepdims=True) * inv_d
    var = jnp.maximum(ex2 - mu * mu, 0.0)
    xn = (x - mu) * lax.rsqrt(var + EPS)
    return xn * gamma + beta


def _mae_fused_kernel(patch_ref, pos_ref, flag_ref,
                      pw_ref, pb_ref, mtok_ref,
                      eg_ref, eb_ref, ew1_ref, eb1_ref, ew2_ref, eb2_ref,
                      dg_ref, db_ref, dw1_ref, db1_ref, dw2_ref, db2_ref,
                      o_ref, *, inv_d):
    patch = patch_ref[0].astype(jnp.bfloat16)          # (tn, patch_dim)
    pos = pos_ref[...]                                  # (tn, d_pad)  f32
    flag = flag_ref[0]                                  # (tn, 1)  1.0 => unmasked

    # ---- PatchEncoding: linear projection + positional embedding ----------
    tok = jnp.dot(patch, pw_ref[...],
                  preferred_element_type=jnp.float32) + pb_ref[...] + pos

    # ---- encoder block: pre-LN per-token MLP with residual ----------------
    xn = _layer_norm_true_d(tok, eg_ref[...], eb_ref[...], inv_d)
    h = jnp.dot(xn.astype(jnp.bfloat16), ew1_ref[...],
                preferred_element_type=jnp.float32) + eb1_ref[...]
    # TODO(synk): PyTorch nn.GELU defaults to exact erf; tanh approximation
    # used here (encoder/decoder source not provided; small numeric delta).
    h = jax.nn.gelu(h, approximate=True)
    enc = tok + jnp.dot(h.astype(jnp.bfloat16), ew2_ref[...],
                        preferred_element_type=jnp.float32) + eb2_ref[...]

    # ---- assemble decoder tokens in ORIGINAL patch order -------------------
    #   unmasked position: encoded + pos      (reference: pos_encoded scatter)
    #   masked   position: mask_token + pos   (reference: masked_embeddings)
    # flag is exactly 0/1 so the arithmetic blend is an exact select.
    row_masked = mtok_ref[...] + pos
    dec_tok = row_masked + flag * ((enc + pos) - row_masked)

    # ---- decoder head: LN -> MLP -> pixels ---------------------------------
    # TODO(synk): reference decoder also receives `encoded` directly; decoder
    # source not provided, so this head reconstructs pixels from the full
    # token sequence only.
    dn = _layer_norm_true_d(dec_tok, dg_ref[...], db_ref[...], inv_d)
    dh = jnp.dot(dn.astype(jnp.bfloat16), dw1_ref[...],
                 preferred_element_type=jnp.float32) + db1_ref[...]
    dh = jax.nn.gelu(dh, approximate=True)
    out = jnp.dot(dh.astype(jnp.bfloat16), dw2_ref[...],
                  preferred_element_type=jnp.float32) + db2_ref[...]

    o_ref[0] = out.astype(o_ref.dtype)


_WEIGHT_NAMES = ("proj_w", "proj_b", "mask_token",
                 "enc_ln_g", "enc_ln_b", "enc_w1", "enc_b1", "enc_w2", "enc_b2",
                 "dec_ln_g", "dec_ln_b", "dec_w1", "dec_b1", "dec_w2", "dec_b2")


# ----------------------------------------------------------------------------
# MAE forward (mirrors MAE.forward)
# ----------------------------------------------------------------------------
def mae_forward(x, params, mask_idx, unmask_idx, emb_dim, *, max_tn=512):
    del mask_idx  # masked set is the complement of unmask_idx (original order)
    B, N, C, P, _ = x.shape
    patch_dim = C * P * P
    d_pad = params["pos_emb"].shape[-1]
    pd_out = params["dec_w2"].shape[-1]

    patches = x.reshape(B, N, patch_dim)                       # free reshape

    # tiny per-position indicator (the only XLA-side index op left)
    bidx = jnp.arange(B)[:, None]
    unmask_flag = jnp.zeros((B, N), jnp.float32).at[bidx, unmask_idx].set(1.0)
    unmask_flag = unmask_flag[..., None]                       # (B, N, 1)

    # keep the grid length >= 2 so "parallel" axes can use both v7x cores
    if B == 1 and N > 32:
        max_tn = min(max_tn, _round_up(pl.cdiv(N, 2), 16))
    tn, nt = _token_tiling(N, max_tn)
    grid = (B, nt)

    weights = tuple(params[k] for k in _WEIGHT_NAMES)

    tiled_specs = [
        pl.BlockSpec((1, tn, patch_dim), lambda b, t: (b, t, 0)),   # patches
        pl.BlockSpec((tn, d_pad), lambda b, t: (t, 0)),             # pos rows
        pl.BlockSpec((1, tn, 1), lambda b, t: (b, t, 0)),           # unmask flag
    ]
    weight_specs = [_resident_spec(w.shape) for w in weights]

    tile_bytes = tn * (patch_dim * 4 + d_pad * 4 + 4 + pd_out * 4)
    weight_bytes = sum(w.size * w.dtype.itemsize for w in weights)

    kernel = functools.partial(_mae_fused_kernel, inv_d=1.0 / float(emb_dim))
    decoded = pl.pallas_call(
        kernel,
        grid=grid,
        in_specs=tiled_specs + weight_specs,
        out_specs=pl.BlockSpec((1, tn, pd_out), lambda b, t: (b, t, 0)),
        out_shape=jax.ShapeDtypeStruct((B, N, pd_out), jnp.float32),
        compiler_params=pltpu.CompilerParams(
            dimension_semantics=("parallel", "parallel"),
            vmem_limit_bytes=_vmem_limit_bytes(tile_bytes, weight_bytes),
        ),
    )(patches, params["pos_emb"], unmask_flag, *weights)

    # identity (elided) whenever patch_dim is already a multiple of 128
    return decoded[..., :patch_dim]
    # TODO(synk): `return_masked=True` branch of the reference is not implemented.


# ----------------------------------------------------------------------------
# Parameter init (deterministic; mirrors _initialize_weights; lane-padded)
# ----------------------------------------------------------------------------
def init_params(key, patch_dim, num_patches, emb_dim, enc_hidden, dec_hidden):
    d_pad = _round_up(emb_dim, LANE)
    eh_pad = _round_up(enc_hidden, LANE)
    dh_pad = _round_up(dec_hidden, LANE)
    pd_out = _round_up(patch_dim, LANE)
    ks = jax.random.split(key, 8)

    def xav(k, fi, fo, pad_in, pad_out):
        # xavier_uniform over the TRUE fan_in/fan_out, zero-pad to lane shapes,
        # stored bf16 (MXU feed dtype; f32 accumulation in-kernel).
        bound = (6.0 / (fi + fo)) ** 0.5
        w = jax.random.uniform(k, (fi, fo), jnp.float32, -bound, bound)
        return jnp.pad(w, ((0, pad_in - fi), (0, pad_out - fo))).astype(jnp.bfloat16)

    ln_gamma = jnp.pad(jnp.ones((1, emb_dim), jnp.float32),
                       ((0, 0), (0, d_pad - emb_dim)))
    zeros_d = jnp.zeros((1, d_pad), jnp.float32)

    p = {}
    # PatchEncoding
    p["proj_w"] = xav(ks[0], patch_dim, emb_dim, patch_dim, d_pad)
    p["proj_b"] = zeros_d
    pos = 0.02 * jax.random.normal(ks[1], (num_patches, emb_dim), jnp.float32)
    p["pos_emb"] = jnp.pad(pos, ((0, 0), (0, d_pad - emb_dim)))
    mtok = 0.02 * jax.random.normal(ks[2], (1, emb_dim), jnp.float32)
    p["mask_token"] = jnp.pad(mtok, ((0, 0), (0, d_pad - emb_dim)))
    # Encoder block (LayerNorm weight=1 / bias=0 per _initialize_weights)
    p["enc_ln_g"] = ln_gamma
    p["enc_ln_b"] = zeros_d
    p["enc_w1"] = xav(ks[3], emb_dim, enc_hidden, d_pad, eh_pad)
    p["enc_b1"] = jnp.zeros((1, eh_pad), jnp.float32)
    p["enc_w2"] = xav(ks[4], enc_hidden, emb_dim, eh_pad, d_pad)
    p["enc_b2"] = zeros_d
    # Decoder head
    p["dec_ln_g"] = ln_gamma
    p["dec_ln_b"] = zeros_d
    p["dec_w1"] = xav(ks[5], emb_dim, dec_hidden, d_pad, dh_pad)
    p["dec_b1"] = jnp.zeros((1, dh_pad), jnp.float32)
    p["dec_w2"] = xav(ks[6], dec_hidden, patch_dim, dh_pad, pd_out)
    p["dec_b2"] = jnp.zeros((1, pd_out), jnp.float32)
    return p


# ----------------------------------------------------------------------------
# pure-JAX reference of the same math (for an in-script correctness check)
# ----------------------------------------------------------------------------
def mae_reference(x, params, unmask_idx, emb_dim):
    B, N, C, P, _ = x.shape
    pd = C * P * P
    patches = x.reshape(B, N, pd)
    pos = params["pos_emb"][None]

    def ln(v, g, b):
        mu = jnp.sum(v, -1, keepdims=True) / emb_dim
        ex2 = jnp.sum(v * v, -1, keepdims=True) / emb_dim
        var = jnp.maximum(ex2 - mu * mu, 0.0)
        return (v - mu) * lax.rsqrt(var + EPS) * g + b

    def mm(a, w):
        return jnp.dot(a.astype(jnp.bfloat16), w, preferred_element_type=jnp.float32)

    tok = mm(patches, params["proj_w"]) + params["proj_b"] + pos
    xn = ln(tok, params["enc_ln_g"], params["enc_ln_b"])
    h = jax.nn.gelu(mm(xn, params["enc_w1"]) + params["enc_b1"], approximate=True)
    enc = tok + mm(h, params["enc_w2"]) + params["enc_b2"]

    bidx = jnp.arange(B)[:, None]
    flag = jnp.zeros((B, N), jnp.float32).at[bidx, unmask_idx].set(1.0)[..., None]
    row_masked = params["mask_token"][None] + pos
    dec_tok = row_masked + flag * ((enc + pos) - row_masked)

    dn = ln(dec_tok, params["dec_ln_g"], params["dec_ln_b"])
    dh = jax.nn.gelu(mm(dn, params["dec_w1"]) + params["dec_b1"], approximate=True)
    out = mm(dh, params["dec_w2"]) + params["dec_b2"]
    return out[..., :pd]


# ----------------------------------------------------------------------------
if __name__ == "__main__":
    # config: image_dim=16, n_patches=4 -> patch_size=4, num_patches=16,
    # mask_proportion=0.75, embedding_dim=32, channels=3, batch=2
    B, n_patches, C, P = 2, 4, 3, 4
    N = n_patches * n_patches
    emb_dim = 32
    mask_proportion = 0.75
    n_mask = int(N * mask_proportion)   # 12 masked, 4 unmasked
    patch_dim = C * P * P               # 48

    root = jax.random.PRNGKey(0)
    k_x, k_param, k_perm = jax.random.split(root, 3)

    x = jax.random.normal(k_x, (B, N, C, P, P), jnp.float32)
    params = init_params(k_param, patch_dim, N, emb_dim,
                         enc_hidden=64, dec_hidden=64)

    # per-batch random permutation -> mask / unmask indices
    perms = jnp.stack([jax.random.permutation(k, N)
                       for k in jax.random.split(k_perm, B)])
    mask_idx = perms[:, :n_mask]      # (B, 12)
    unmask_idx = perms[:, n_mask:]    # (B, 4)

    fwd = jax.jit(functools.partial(mae_forward, emb_dim=emb_dim))
    decoded = jax.block_until_ready(fwd(x, params, mask_idx, unmask_idx))

    assert decoded.shape == (B, N, patch_dim), decoded.shape
    assert bool(jnp.all(jnp.isfinite(decoded)))

    ref = mae_reference(x, params, unmask_idx, emb_dim)
    max_err = float(jnp.max(jnp.abs(decoded - ref)))
    assert jnp.allclose(decoded, ref, atol=5e-2, rtol=5e-2), max_err

    print("KERNEL_OK")
</pallas_src>

<mosaic_0001>
module attributes {stable_mosaic.version = 11 : i64} {
  func.func @_mae_fused_kernel(%arg0: i32, %arg1: i32, %arg2: memref<1x16x48xf32, #tpu.memory_space<vmem>>, %arg3: memref<16x128xf32, #tpu.memory_space<vmem>>, %arg4: memref<1x16x1xf32, #tpu.memory_space<vmem>>, %arg5: memref<48x128xbf16, #tpu.memory_space<vmem>>, %arg6: memref<1x128xf32, #tpu.memory_space<vmem>>, %arg7: memref<1x128xf32, #tpu.memory_space<vmem>>, %arg8: memref<1x128xf32, #tpu.memory_space<vmem>>, %arg9: memref<1x128xf32, #tpu.memory_space<vmem>>, %arg10: memref<128x128xbf16, #tpu.memory_space<vmem>>, %arg11: memref<1x128xf32, #tpu.memory_space<vmem>>, %arg12: memref<128x128xbf16, #tpu.memory_space<vmem>>, %arg13: memref<1x128xf32, #tpu.memory_space<vmem>>, %arg14: memref<1x128xf32, #tpu.memory_space<vmem>>, %arg15: memref<1x128xf32, #tpu.memory_space<vmem>>, %arg16: memref<128x128xbf16, #tpu.memory_space<vmem>>, %arg17: memref<1x128xf32, #tpu.memory_space<vmem>>, %arg18: memref<128x128xbf16, #tpu.memory_space<vmem>>, %arg19: memref<1x128xf32, #tpu.memory_space<vmem>>, %arg20: memref<1x16x128xf32, #tpu.memory_space<vmem>>) attributes {dimension_semantics = [#tpu.dimension_semantics<parallel>, #tpu.dimension_semantics<parallel>], iteration_bounds = array<i64: 2, 1>, scalar_prefetch = 0 : i64, scratch_operands = 0 : i64, tpu.core_type = #tpu.core_type<tc>, window_params = [{transform_indices = @transform_0, window_bounds = array<i64: 1, 16, 48>}, {transform_indices = @transform_1, window_bounds = array<i64: 16, 128>}, {transform_indices = @transform_2, window_bounds = array<i64: 1, 16, 1>}, {pipeline_mode = #tpu.pipeline_mode<synchronous>, transform_indices = @transform_3, window_bounds = array<i64: 48, 128>}, {pipeline_mode = #tpu.pipeline_mode<synchronous>, transform_indices = @transform_4, window_bounds = array<i64: 1, 128>}, {pipeline_mode = #tpu.pipeline_mode<synchronous>, transform_indices = @transform_5, window_bounds = array<i64: 1, 128>}, {pipeline_mode = #tpu.pipeline_mode<synchronous>, transform_indices = @transform_6, window_bounds = array<i64: 1, 128>}, {pipeline_mode = #tpu.pipeline_mode<synchronous>, transform_indices = @transform_7, window_bounds = array<i64: 1, 128>}, {pipeline_mode = #tpu.pipeline_mode<synchronous>, transform_indices = @transform_8, window_bounds = array<i64: 128, 128>}, {pipeline_mode = #tpu.pipeline_mode<synchronous>, transform_indices = @transform_9, window_bounds = array<i64: 1, 128>}, {pipeline_mode = #tpu.pipeline_mode<synchronous>, transform_indices = @transform_10, window_bounds = array<i64: 128, 128>}, {pipeline_mode = #tpu.pipeline_mode<synchronous>, transform_indices = @transform_11, window_bounds = array<i64: 1, 128>}, {pipeline_mode = #tpu.pipeline_mode<synchronous>, transform_indices = @transform_12, window_bounds = array<i64: 1, 128>}, {pipeline_mode = #tpu.pipeline_mode<synchronous>, transform_indices = @transform_13, window_bounds = array<i64: 1, 128>}, {pipeline_mode = #tpu.pipeline_mode<synchronous>, transform_indices = @transform_14, window_bounds = array<i64: 128, 128>}, {pipeline_mode = #tpu.pipeline_mode<synchronous>, transform_indices = @transform_15, window_bounds = array<i64: 1, 128>}, {pipeline_mode = #tpu.pipeline_mode<synchronous>, transform_indices = @transform_16, window_bounds = array<i64: 128, 128>}, {pipeline_mode = #tpu.pipeline_mode<synchronous>, transform_indices = @transform_17, window_bounds = array<i64: 1, 128>}, {transform_indices = @transform_18, window_bounds = array<i64: 1, 16, 128>}]} {
    %c0 = arith.constant 0 : index
    %c0_0 = arith.constant 0 : index
    %c0_1 = arith.constant 0 : index
    %0 = vector.load %arg2[%c0, %c0_0, %c0_1] : memref<1x16x48xf32, #tpu.memory_space<vmem>>, vector<1x16x48xf32>
    %1 = vector.shape_cast %0 : vector<1x16x48xf32> to vector<16x48xf32>
    %2 = arith.truncf %1 : vector<16x48xf32> to vector<16x48xbf16>
    %c0_2 = arith.constant 0 : index
    %c0_3 = arith.constant 0 : index
    %3 = vector.load %arg3[%c0_2, %c0_3] : memref<16x128xf32, #tpu.memory_space<vmem>>, vector<16x128xf32>
    %c0_4 = arith.constant 0 : index
    %c0_5 = arith.constant 0 : index
    %c0_6 = arith.constant 0 : index
    %4 = vector.load %arg4[%c0_4, %c0_5, %c0_6] : memref<1x16x1xf32, #tpu.memory_space<vmem>>, vector<1x16x1xf32>
    %5 = vector.shape_cast %4 : vector<1x16x1xf32> to vector<16x1xf32>
    %c0_7 = arith.constant 0 : index
    %c0_8 = arith.constant 0 : index
    %6 = vector.load %arg5[%c0_7, %c0_8] : memref<48x128xbf16, #tpu.memory_space<vmem>>, vector<48x128xbf16>
    %cst = arith.constant dense<0.000000e+00> : vector<16x128xf32>
    %7 = tpu.matmul %2, %6, %cst {dimension_numbers = #tpu.dot_dimension_numbers<[1], [0], [0], [1], [0, 0, 1, 1], [], []>} : vector<16x48xbf16>, vector<48x128xbf16>, vector<16x128xf32> -> vector<16x128xf32>
    %c0_9 = arith.constant 0 : index
    %c0_10 = arith.constant 0 : index
    %8 = vector.load %arg6[%c0_9, %c0_10] : memref<1x128xf32, #tpu.memory_space<vmem>>, vector<1x128xf32>
    %9 = vector.broadcast %8 : vector<1x128xf32> to vector<16x128xf32>
    %10 = arith.addf %7, %9 : vector<16x128xf32>
    %11 = arith.addf %10, %3 : vector<16x128xf32>
    %c0_11 = arith.constant 0 : index
    %c0_12 = arith.constant 0 : index
    %12 = vector.load %arg8[%c0_11, %c0_12] : memref<1x128xf32, #tpu.memory_space<vmem>>, vector<1x128xf32>
    %c0_13 = arith.constant 0 : index
    %c0_14 = arith.constant 0 : index
    %13 = vector.load %arg9[%c0_13, %c0_14] : memref<1x128xf32, #tpu.memory_space<vmem>>, vector<1x128xf32>
    %cst_15 = arith.constant dense<0.000000e+00> : vector<16xf32>
    %14 = vector.multi_reduction <add>, %11, %cst_15 [1] : vector<16x128xf32> to vector<16xf32>
    %15 = vector.shape_cast %14 : vector<16xf32> to vector<16x1xf32>
    %cst_16 = arith.constant 3.125000e-02 : f32
    %16 = vector.broadcast %cst_16 : f32 to vector<16x1xf32>
    %17 = arith.mulf %15, %16 : vector<16x1xf32>
    %18 = arith.mulf %11, %11 : vector<16x128xf32>
    %cst_17 = arith.constant dense<0.000000e+00> : vector<16xf32>
    %19 = vector.multi_reduction <add>, %18, %cst_17 [1] : vector<16x128xf32> to vector<16xf32>
    %20 = vector.shape_cast %19 : vector<16xf32> to vector<16x1xf32>
    %cst_18 = arith.constant 3.125000e-02 : f32
    %21 = vector.broadcast %cst_18 : f32 to vector<16x1xf32>
    %22 = arith.mulf %20, %21 : vector<16x1xf32>
    %23 = arith.mulf %17, %17 : vector<16x1xf32>
    %24 = arith.subf %22, %23 : vector<16x1xf32>
    %cst_19 = arith.constant 0.000000e+00 : f32
    %25 = vector.broadcast %cst_19 : f32 to vector<16x1xf32>
    %26 = arith.maximumf %24, %25 : vector<16x1xf32>
    %27 = vector.broadcast %17 : vector<16x1xf32> to vector<16x128xf32>
    %28 = arith.subf %11, %27 : vector<16x128xf32>
    %cst_20 = arith.constant 9.99999974E-6 : f32
    %29 = vector.broadcast %cst_20 : f32 to vector<16x1xf32>
    %30 = arith.addf %26, %29 : vector<16x1xf32>
    %31 = math.rsqrt %30 : vector<16x1xf32>
    %32 = vector.broadcast %31 : vector<16x1xf32> to vector<16x128xf32>
    %33 = arith.mulf %28, %32 : vector<16x128xf32>
    %34 = vector.broadcast %12 : vector<1x128xf32> to vector<16x128xf32>
    %35 = arith.mulf %33, %34 : vector<16x128xf32>
    %36 = vector.broadcast %13 : vector<1x128xf32> to vector<16x128xf32>
    %37 = arith.addf %35, %36 : vector<16x128xf32>
    %38 = arith.truncf %37 : vector<16x128xf32> to vector<16x128xbf16>
    %c0_21 = arith.constant 0 : index
    %c0_22 = arith.constant 0 : index
    %39 = vector.load %arg10[%c0_21, %c0_22] : memref<128x128xbf16, #tpu.memory_space<vmem>>, vector<128x128xbf16>
    %cst_23 = arith.constant dense<0.000000e+00> : vector<16x128xf32>
    %40 = tpu.matmul %38, %39, %cst_23 {dimension_numbers = #tpu.dot_dimension_numbers<[1], [0], [0], [1], [0, 0, 1, 1], [], []>} : vector<16x128xbf16>, vector<128x128xbf16>, vector<16x128xf32> -> vector<16x128xf32>
    %c0_24 = arith.constant 0 : index
    %c0_25 = arith.constant 0 : index
    %41 = vector.load %arg11[%c0_24, %c0_25] : memref<1x128xf32, #tpu.memory_space<vmem>>, vector<1x128xf32>
    %42 = vector.broadcast %41 : vector<1x128xf32> to vector<16x128xf32>
    %43 = arith.addf %40, %42 : vector<16x128xf32>
    %44 = arith.mulf %43, %43 : vector<16x128xf32>
    %45 = arith.mulf %43, %44 : vector<16x128xf32>
    %cst_26 = arith.constant 4.471500e-02 : f32
    %46 = vector.broadcast %cst_26 : f32 to vector<16x128xf32>
    %47 = arith.mulf %46, %45 : vector<16x128xf32>
    %48 = arith.addf %43, %47 : vector<16x128xf32>
    %cst_27 = arith.constant 0.797884583 : f32
    %49 = vector.broadcast %cst_27 : f32 to vector<16x128xf32>
    %50 = arith.mulf %49, %48 : vector<16x128xf32>
    %51 = math.tanh %50 : vector<16x128xf32>
    %cst_28 = arith.constant 1.000000e+00 : f32
    %52 = vector.broadcast %cst_28 : f32 to vector<16x128xf32>
    %53 = arith.addf %52, %51 : vector<16x128xf32>
    %cst_29 = arith.constant 5.000000e-01 : f32
    %54 = vector.broadcast %cst_29 : f32 to vector<16x128xf32>
    %55 = arith.mulf %54, %53 : vector<16x128xf32>
    %56 = arith.mulf %43, %55 : vector<16x128xf32>
    %57 = arith.truncf %56 : vector<16x128xf32> to vector<16x128xbf16>
    %c0_30 = arith.constant 0 : index
    %c0_31 = arith.constant 0 : index
    %58 = vector.load %arg12[%c0_30, %c0_31] : memref<128x128xbf16, #tpu.memory_space<vmem>>, vector<128x128xbf16>
    %cst_32 = arith.constant dense<0.000000e+00> : vector<16x128xf32>
    %59 = tpu.matmul %57, %58, %cst_32 {dimension_numbers = #tpu.dot_dimension_numbers<[1], [0], [0], [1], [0, 0, 1, 1], [], []>} : vector<16x128xbf16>, vector<128x128xbf16>, vector<16x128xf32> -> vector<16x128xf32>
    %60 = arith.addf %11, %59 : vector<16x128xf32>
    %c0_33 = arith.constant 0 : index
    %c0_34 = arith.constant 0 : index
    %61 = vector.load %arg13[%c0_33, %c0_34] : memref<1x128xf32, #tpu.memory_space<vmem>>, vector<1x128xf32>
    %62 = vector.broadcast %61 : vector<1x128xf32> to vector<16x128xf32>
    %63 = arith.addf %60, %62 : vector<16x128xf32>
    %c0_35 = arith.constant 0 : index
    %c0_36 = arith.constant 0 : index
    %64 = vector.load %arg7[%c0_35, %c0_36] : memref<1x128xf32, #tpu.memory_space<vmem>>, vector<1x128xf32>
    %65 = vector.broadcast %64 : vector<1x128xf32> to vector<16x128xf32>
    %66 = arith.addf %65, %3 : vector<16x128xf32>
    %67 = arith.addf %63, %3 : vector<16x128xf32>
    %68 = arith.subf %67, %66 : vector<16x128xf32>
    %69 = vector.broadcast %5 : vector<16x1xf32> to vector<16x128xf32>
    %70 = arith.mulf %69, %68 : vector<16x128xf32>
    %71 = arith.addf %66, %70 : vector<16x128xf32>
    %c0_37 = arith.constant 0 : index
    %c0_38 = arith.constant 0 : index
    %72 = vector.load %arg14[%c0_37, %c0_38] : memref<1x128xf32, #tpu.memory_space<vmem>>, vector<1x128xf32>
    %c0_39 = arith.constant 0 : index
    %c0_40 = arith.constant 0 : index
    %73 = vector.load %arg15[%c0_39, %c0_40] : memref<1x128xf32, #tpu.memory_space<vmem>>, vector<1x128xf32>
    %cst_41 = arith.constant dense<0.000000e+00> : vector<16xf32>
    %74 = vector.multi_reduction <add>, %71, %cst_41 [1] : vector<16x128xf32> to vector<16xf32>
    %75 = vector.shape_cast %74 : vector<16xf32> to vector<16x1xf32>
    %cst_42 = arith.constant 3.125000e-02 : f32
    %76 = vector.broadcast %cst_42 : f32 to vector<16x1xf32>
    %77 = arith.mulf %75, %76 : vector<16x1xf32>
    %78 = arith.mulf %71, %71 : vector<16x128xf32>
    %cst_43 = arith.constant dense<0.000000e+00> : vector<16xf32>
    %79 = vector.multi_reduction <add>, %78, %cst_43 [1] : vector<16x128xf32> to vector<16xf32>
    %80 = vector.shape_cast %79 : vector<16xf32> to vector<16x1xf32>
    %cst_44 = arith.constant 3.125000e-02 : f32
    %81 = vector.broadcast %cst_44 : f32 to vector<16x1xf32>
    %82 = arith.mulf %80, %81 : vector<16x1xf32>
    %83 = arith.mulf %77, %77 : vector<16x1xf32>
    %84 = arith.subf %82, %83 : vector<16x1xf32>
    %cst_45 = arith.constant 0.000000e+00 : f32
    %85 = vector.broadcast %cst_45 : f32 to vector<16x1xf32>
    %86 = arith.maximumf %84, %85 : vector<16x1xf32>
    %87 = vector.broadcast %77 : vector<16x1xf32> to vector<16x128xf32>
    %88 = arith.subf %71, %87 : vector<16x128xf32>
    %cst_46 = arith.constant 9.99999974E-6 : f32
    %89 = vector.broadcast %cst_46 : f32 to vector<16x1xf32>
    %90 = arith.addf %86, %89 : vector<16x1xf32>
    %91 = math.rsqrt %90 : vector<16x1xf32>
    %92 = vector.broadcast %91 : vector<16x1xf32> to vector<16x128xf32>
    %93 = arith.mulf %88, %92 : vector<16x128xf32>
    %94 = vector.broadcast %72 : vector<1x128xf32> to vector<16x128xf32>
    %95 = arith.mulf %93, %94 : vector<16x128xf32>
    %96 = vector.broadcast %73 : vector<1x128xf32> to vector<16x128xf32>
    %97 = arith.addf %95, %96 : vector<16x128xf32>
    %98 = arith.truncf %97 : vector<16x128xf32> to vector<16x128xbf16>
    %c0_47 = arith.constant 0 : index
    %c0_48 = arith.constant 0 : index
    %99 = vector.load %arg16[%c0_47, %c0_48] : memref<128x128xbf16, #tpu.memory_space<vmem>>, vector<128x128xbf16>
    %cst_49 = arith.constant dense<0.000000e+00> : vector<16x128xf32>
    %100 = tpu.matmul %98, %99, %cst_49 {dimension_numbers = #tpu.dot_dimension_numbers<[1], [0], [0], [1], [0, 0, 1, 1], [], []>} : vector<16x128xbf16>, vector<128x128xbf16>, vector<16x128xf32> -> vector<16x128xf32>
    %c0_50 = arith.constant 0 : index
    %c0_51 = arith.constant 0 : index
    %101 = vector.load %arg17[%c0_50, %c0_51] : memref<1x128xf32, #tpu.memory_space<vmem>>, vector<1x128xf32>
    %102 = vector.broadcast %101 : vector<1x128xf32> to vector<16x128xf32>
    %103 = arith.addf %100, %102 : vector<16x128xf32>
    %104 = arith.mulf %103, %103 : vector<16x128xf32>
    %105 = arith.mulf %103, %104 : vector<16x128xf32>
    %cst_52 = arith.constant 4.471500e-02 : f32
    %106 = vector.broadcast %cst_52 : f32 to vector<16x128xf32>
    %107 = arith.mulf %106, %105 : vector<16x128xf32>
    %108 = arith.addf %103, %107 : vector<16x128xf32>
    %cst_53 = arith.constant 0.797884583 : f32
    %109 = vector.broadcast %cst_53 : f32 to vector<16x128xf32>
    %110 = arith.mulf %109, %108 : vector<16x128xf32>
    %111 = math.tanh %110 : vector<16x128xf32>
    %cst_54 = arith.constant 1.000000e+00 : f32
    %112 = vector.broadcast %cst_54 : f32 to vector<16x128xf32>
    %113 = arith.addf %112, %111 : vector<16x128xf32>
    %cst_55 = arith.constant 5.000000e-01 : f32
    %114 = vector.broadcast %cst_55 : f32 to vector<16x128xf32>
    %115 = arith.mulf %114, %113 : vector<16x128xf32>
    %116 = arith.mulf %103, %115 : vector<16x128xf32>
    %117 = arith.truncf %116 : vector<16x128xf32> to vector<16x128xbf16>
    %c0_56 = arith.constant 0 : index
    %c0_57 = arith.constant 0 : index
    %118 = vector.load %arg18[%c0_56, %c0_57] : memref<128x128xbf16, #tpu.memory_space<vmem>>, vector<128x128xbf16>
    %cst_58 = arith.constant dense<0.000000e+00> : vector<16x128xf32>
    %119 = tpu.matmul %117, %118, %cst_58 {dimension_numbers = #tpu.dot_dimension_numbers<[1], [0], [0], [1], [0, 0, 1, 1], [], []>} : vector<16x128xbf16>, vector<128x128xbf16>, vector<16x128xf32> -> vector<16x128xf32>
    %c0_59 = arith.constant 0 : index
    %c0_60 = arith.constant 0 : index
    %120 = vector.load %arg19[%c0_59, %c0_60] : memref<1x128xf32, #tpu.memory_space<vmem>>, vector<1x128xf32>
    %121 = vector.broadcast %120 : vector<1x128xf32> to vector<16x128xf32>
    %122 = arith.addf %119, %121 : vector<16x128xf32>
    %c0_61 = arith.constant 0 : index
    %c0_62 = arith.constant 0 : index
    %c0_63 = arith.constant 0 : index
    %123 = vector.load %arg20[%c0_61, %c0_62, %c0_63] : memref<1x16x128xf32, #tpu.memory_space<vmem>>, vector<1x16x128xf32>
    %124 = vector.shape_cast %123 : vector<1x16x128xf32> to vector<16x128xf32>
    %125 = vector.shape_cast %122 : vector<16x128xf32> to vector<1x16x128xf32>
    tpu.vector_store %arg20[%c0_61, %c0_62, %c0_63], %125 {strides = array<i32>} : memref<1x16x128xf32, #tpu.memory_space<vmem>>, vector<1x16x128xf32>,
    return
  }
  func.func @transform_0(%arg0: i32, %arg1: i32) -> (i32, i32, i32) {
    %c0_i32 = arith.constant 0 : i32
    %c0_i32_0 = arith.constant 0 : i32
    return %arg0, %arg1, %c0_i32 : i32, i32, i32
  }
  func.func @transform_1(%arg0: i32, %arg1: i32) -> (i32, i32) {
    %c0_i32 = arith.constant 0 : i32
    %c0_i32_0 = arith.constant 0 : i32
    return %arg1, %c0_i32 : i32, i32
  }
  func.func @transform_2(%arg0: i32, %arg1: i32) -> (i32, i32, i32) {
    %c0_i32 = arith.constant 0 : i32
    %c0_i32_0 = arith.constant 0 : i32
    return %arg0, %arg1, %c0_i32 : i32, i32, i32
  }
  func.func @transform_3(%arg0: i32, %arg1: i32) -> (i32, i32) {
    %c0_i32 = arith.constant 0 : i32
    %c0_i32_0 = arith.constant 0 : i32
    %c0_i32_1 = arith.constant 0 : i32
    return %c0_i32, %c0_i32_0 : i32, i32
  }
  func.func @transform_4(%arg0: i32, %arg1: i32) -> (i32, i32) {
    %c0_i32 = arith.constant 0 : i32
    %c0_i32_0 = arith.constant 0 : i32
    %c0_i32_1 = arith.constant 0 : i32
    return %c0_i32, %c0_i32_0 : i32, i32
  }
  func.func @transform_5(%arg0: i32, %arg1: i32) -> (i32, i32) {
    %c0_i32 = arith.constant 0 : i32
    %c0_i32_0 = arith.constant 0 : i32
    %c0_i32_1 = arith.constant 0 : i32
    return %c0_i32, %c0_i32_0 : i32, i32
  }
  func.func @transform_6(%arg0: i32, %arg1: i32) -> (i32, i32) {
    %c0_i32 = arith.constant 0 : i32
    %c0_i32_0 = arith.constant 0 : i32
    %c0_i32_1 = arith.constant 0 : i32
    return %c0_i32, %c0_i32_0 : i32, i32
  }
  func.func @transform_7(%arg0: i32, %arg1: i32) -> (i32, i32) {
    %c0_i32 = arith.constant 0 : i32
    %c0_i32_0 = arith.constant 0 : i32
    %c0_i32_1 = arith.constant 0 : i32
    return %c0_i32, %c0_i32_0 : i32, i32
  }
  func.func @transform_8(%arg0: i32, %arg1: i32) -> (i32, i32) {
    %c0_i32 = arith.constant 0 : i32
    %c0_i32_0 = arith.constant 0 : i32
    %c0_i32_1 = arith.constant 0 : i32
    return %c0_i32, %c0_i32_0 : i32, i32
  }
  func.func @transform_9(%arg0: i32, %arg1: i32) -> (i32, i32) {
    %c0_i32 = arith.constant 0 : i32
    %c0_i32_0 = arith.constant 0 : i32
    %c0_i32_1 = arith.constant 0 : i32
    return %c0_i32, %c0_i32_0 : i32, i32
  }
  func.func @transform_10(%arg0: i32, %arg1: i32) -> (i32, i32) {
    %c0_i32 = arith.constant 0 : i32
    %c0_i32_0 = arith.constant 0 : i32
    %c0_i32_1 = arith.constant 0 : i32
    return %c0_i32, %c0_i32_0 : i32, i32
  }
  func.func @transform_11(%arg0: i32, %arg1: i32) -> (i32, i32) {
    %c0_i32 = arith.constant 0 : i32
    %c0_i32_0 = arith.constant 0 : i32
    %c0_i32_1 = arith.constant 0 : i32
    return %c0_i32, %c0_i32_0 : i32, i32
  }
  func.func @transform_12(%arg0: i32, %arg1: i32) -> (i32, i32) {
    %c0_i32 = arith.constant 0 : i32
    %c0_i32_0 = arith.constant 0 : i32
    %c0_i32_1 = arith.constant 0 : i32
    return %c0_i32, %c0_i32_0 : i32, i32
  }
  func.func @transform_13(%arg0: i32, %arg1: i32) -> (i32, i32) {
    %c0_i32 = arith.constant 0 : i32
    %c0_i32_0 = arith.constant 0 : i32
    %c0_i32_1 = arith.constant 0 : i32
    return %c0_i32, %c0_i32_0 : i32, i32
  }
  func.func @transform_14(%arg0: i32, %arg1: i32) -> (i32, i32) {
    %c0_i32 = arith.constant 0 : i32
    %c0_i32_0 = arith.constant 0 : i32
    %c0_i32_1 = arith.constant 0 : i32
    return %c0_i32, %c0_i32_0 : i32, i32
  }
  func.func @transform_15(%arg0: i32, %arg1: i32) -> (i32, i32) {
    %c0_i32 = arith.constant 0 : i32
    %c0_i32_0 = arith.constant 0 : i32
    %c0_i32_1 = arith.constant 0 : i32
    return %c0_i32, %c0_i32_0 : i32, i32
  }
  func.func @transform_16(%arg0: i32, %arg1: i32) -> (i32, i32) {
    %c0_i32 = arith.constant 0 : i32
    %c0_i32_0 = arith.constant 0 : i32
    %c0_i32_1 = arith.constant 0 : i32
    return %c0_i32, %c0_i32_0 : i32, i32
  }
  func.func @transform_17(%arg0: i32, %arg1: i32) -> (i32, i32) {
    %c0_i32 = arith.constant 0 : i32
    %c0_i32_0 = arith.constant 0 : i32
    %c0_i32_1 = arith.constant 0 : i32
    return %c0_i32, %c0_i32_0 : i32, i32
  }
  func.func @transform_18(%arg0: i32, %arg1: i32) -> (i32, i32, i32) {
    %c0_i32 = arith.constant 0 : i32
    %c0_i32_0 = arith.constant 0 : i32
    return %arg0, %arg1, %c0_i32 : i32, i32, i32
  }
}

</mosaic_0001>

<llo_original>
// kernel: mae_forward.1
$region0: #{mae_forward.1}
  #allocation0 [shape = 'u32[]', space=smem, size = 0x4, offset = 0x4, fixed_abs, tag = 'smem constant byte address 0x4 - core index']
  #allocation1 [shape = 'u32[144,128]{1,0:T(1,128)}', space=vmem, size = 0x12000, scoped, tag = 'internal scratch']
  %s0 = inlined_call_operand.vmem [shape: f32[2,16,48], index: 0, kind: input, shape index: {}]
  %s1 = inlined_call_operand.vmem [shape: f32[16,128], index: 1, kind: input, shape index: {}]
  %s2 = inlined_call_operand.vmem [shape: f32[2,16,1], index: 2, kind: input, shape index: {}]
  %s3 = inlined_call_operand.vmem [shape: bf16[48,128], index: 3, kind: input, shape index: {}]
  %s4 = inlined_call_operand.vmem [shape: f32[1,128], index: 4, kind: input, shape index: {}]
  %s5 = inlined_call_operand.vmem [shape: f32[1,128], index: 5, kind: input, shape index: {}]
  %s6 = inlined_call_operand.vmem [shape: f32[1,128], index: 6, kind: input, shape index: {}]
  %s7 = inlined_call_operand.vmem [shape: f32[1,128], index: 7, kind: input, shape index: {}]
  %s8 = inlined_call_operand.vmem [shape: bf16[128,128], index: 8, kind: input, shape index: {}]
  %s9 = inlined_call_operand.vmem [shape: f32[1,128], index: 9, kind: input, shape index: {}]
  %s10 = inlined_call_operand.vmem [shape: bf16[128,128], index: 10, kind: input, shape index: {}]
  %s11 = inlined_call_operand.vmem [shape: f32[1,128], index: 11, kind: input, shape index: {}]
  %s12 = inlined_call_operand.vmem [shape: f32[1,128], index: 12, kind: input, shape index: {}]
  %s13 = inlined_call_operand.vmem [shape: f32[1,128], index: 13, kind: input, shape index: {}]
  %s14 = inlined_call_operand.vmem [shape: bf16[128,128], index: 14, kind: input, shape index: {}]
  %s15 = inlined_call_operand.vmem [shape: f32[1,128], index: 15, kind: input, shape index: {}]
  %s16 = inlined_call_operand.vmem [shape: bf16[128,128], index: 16, kind: input, shape index: {}]
  %s17 = inlined_call_operand.vmem [shape: f32[1,128], index: 17, kind: input, shape index: {}]
  %s18 = inlined_call_operand.hbm [shape: f32[2,16,128], index: 18, kind: output, shape index: {}]
  %s19 = sld [smem:[#allocation0]]
  $region105: #{mae_forward.1} parent=0
    _
  %s21 = ssub.s32 1, %s19
  %s22 = scalar_select 0, %s21, %s19
  $region1: #{mae_forward.1} parent=0
    #allocation2 [shape = 'u8[16384]{0}', space=vmem, size = 0x4000, scoped, tag = 'output window, operand 0']
    #allocation3 [shape = 's32[2]{0}', space=sflag, size = 0x8, scoped, tag = 'scoped memory for mae_forward.1']
    %23 = vsyncpa [#allocation3], 0
    %s24 = scalar_lea.sflag [#allocation3], 1
    %25 = vsyncpa %s24, 0
    loop: start=0, step=1, limit=4
    $region2: #{mae_forward.1} parent=1 // loop_pre_header
      _
    $region3: #{mae_forward.1} parent=1 // loop_header
      %s27 = sphi 0, %s31
      %p28 = scmp.ge.s32.totalorder %s27, 4
      %s34 = sphi 0, %s46
      %s35 = sphi 0, %s42
      %s36 = sphi 0, %s34
      %s37 = sphi 0, %s35
      %s38 = sphi 0, %s36
      %s39 = sphi 0, %s37
      %s51 = sphi 0, %s53
      %s54 = sphi 0, %s51
      %s55 = sphi 0, %s54
      %s71 = sphi 0, %s55
      %s77 = sphi 0, %s79
      %s80 = sphi 0, %s77
      %s81 = sphi 0, %s80
      %s97 = sphi 0, %s81
      %s105 = sphi 0, %s107
      %s108 = sphi 0, %s105
      %s109 = sphi 0, %s108
      %s125 = sphi 0, %s109
      %s129 = sphi 0, %s129
      %s131 = sphi 0, %s129
      %s132 = sphi 0, %s131
      %s146 = sphi 0, %s132
      %s150 = sphi 0, %s150
      %s152 = sphi 0, %s150
      %s153 = sphi 0, %s152
      %s167 = sphi 0, %s153
      %s171 = sphi 0, %s171
      %s173 = sphi 0, %s171
      %s174 = sphi 0, %s173
      %s188 = sphi 0, %s174
      %s192 = sphi 0, %s192
      %s194 = sphi 0, %s192
      %s195 = sphi 0, %s194
      %s209 = sphi 0, %s195
      %s213 = sphi 0, %s213
      %s215 = sphi 0, %s213
      %s216 = sphi 0, %s215
      %s230 = sphi 0, %s216
      %s234 = sphi 0, %s234
      %s236 = sphi 0, %s234
      %s237 = sphi 0, %s236
      %s251 = sphi 0, %s237
      %s255 = sphi 0, %s255
      %s257 = sphi 0, %s255
      %s258 = sphi 0, %s257
      %s272 = sphi 0, %s258
      %s276 = sphi 0, %s276
      %s278 = sphi 0, %s276
      %s279 = sphi 0, %s278
      %s293 = sphi 0, %s279
      %s297 = sphi 0, %s297
      %s299 = sphi 0, %s297
      %s300 = sphi 0, %s299
      %s314 = sphi 0, %s300
      %s318 = sphi 0, %s318
      %s320 = sphi 0, %s318
      %s321 = sphi 0, %s320
      %s335 = sphi 0, %s321
      %s339 = sphi 0, %s339
      %s341 = sphi 0, %s339
      %s342 = sphi 0, %s341
      %s356 = sphi 0, %s342
      %s360 = sphi 0, %s360
      %s362 = sphi 0, %s360
      %s363 = sphi 0, %s362
      %s377 = sphi 0, %s363
      %s381 = sphi 0, %s381
      %s383 = sphi 0, %s381
      %s384 = sphi 0, %s383
      %s398 = sphi 0, %s384
      %s402 = sphi 0, %s402
      %s404 = sphi 0, %s402
      %s405 = sphi 0, %s404
      %s419 = sphi 0, %s405
      %s423 = sphi 0, %s423
      %s425 = sphi 0, %s423
      %s426 = sphi 0, %s425
      %s440 = sphi 0, %s426
      %s448 = sphi 0, %s450
      %s451 = sphi 0, %s448
      %s452 = sphi 0, %s451
      %s468 = sphi 0, %s452
    $region4: #{mae_forward.1} parent=1 // loop_header_branch
      %30 = sbr.rel (%p28) target = $region8
    $region5: #{mae_forward.1} parent=1 // loop_body
      %s32 = ssub.s32 %s27, 1
      %s33 = ssub.s32 %s27, 2
      %s40 = sadd.s32 1, %s35
      %p41 = scmp.ge.s32.totalorder %s40, 1
      %s42 = scalar_select %p41, 0, %s40
      %s43 = sadd.s32 1, %s34
      %s44 = scalar_select %p41, %s43, %s34
      %p45 = scmp.ge.s32.totalorder %s44, 2
      %s46 = scalar_select %p45, 0, %s44
      %s47 = ssub.s32 %s34, %s46
      %s48 = ssub.s32 %s35, %s42
      %s49 = sor.u32 %s47, %s48
      %p50 = scmp.eq.s32.totalorder %s49, 0
      %s52 = sadd.s32 %s51, 1
      %s53 = scalar_select %p50, %s51, %s52
      %p56 = pneg %p50
      %p57 = scmp.eq.s32.totalorder %s27, 1
      %p58 = por %p56, %p57
      %p59 = scmp.ne.s32.totalorder %s51, %s54
      %p60 = scmp.eq.s32.totalorder %s27, 0
      %p61 = por %p59, %p60
      %p62 = scmp.ne.s32.totalorder %s51, %s54
      %p63 = scmp.eq.s32.totalorder %s32, 1
      %p64 = por %p62, %p63
      %p65 = scmp.ne.s32.totalorder %s54, %s55
      %p66 = scmp.eq.s32.totalorder %s32, 0
      %p67 = por %p65, %p66
      %p68 = scmp.ne.s32.totalorder %s54, %s55
      %p69 = scmp.eq.s32.totalorder %s33, 1
      %p70 = por %p68, %p69
      %p72 = scmp.ne.s32.totalorder %s55, %s71
      %p73 = scmp.eq.s32.totalorder %s33, 0
      %p74 = por %p72, %p73
      %s75 = ssub.s32 %s35, %s42
      %p76 = scmp.eq.s32.totalorder %s75, 0
      %s78 = sadd.s32 %s77, 1
      %s79 = scalar_select %p76, %s77, %s78
      %p82 = pneg %p76
      %p83 = scmp.eq.s32.totalorder %s27, 1
      %p84 = por %p82, %p83
      %p85 = scmp.ne.s32.totalorder %s77, %s80
      %p86 = scmp.eq.s32.totalorder %s27, 0
      %p87 = por %p85, %p86
      %p88 = scmp.ne.s32.totalorder %s77, %s80
      %p89 = scmp.eq.s32.totalorder %s32, 1
      %p90 = por %p88, %p89
      %p91 = scmp.ne.s32.totalorder %s80, %s81
      %p92 = scmp.eq.s32.totalorder %s32, 0
      %p93 = por %p91, %p92
      %p94 = scmp.ne.s32.totalorder %s80, %s81
      %p95 = scmp.eq.s32.totalorder %s33, 1
      %p96 = por %p94, %p95
      %p98 = scmp.ne.s32.totalorder %s81, %s97
      %p99 = scmp.eq.s32.totalorder %s33, 0
      %p100 = por %p98, %p99
      %s101 = ssub.s32 %s34, %s46
      %s102 = ssub.s32 %s35, %s42
      %s103 = sor.u32 %s101, %s102
      %p104 = scmp.eq.s32.totalorder %s103, 0
      %s106 = sadd.s32 %s105, 1
      %s107 = scalar_select %p104, %s105, %s106
      %p110 = pneg %p104
      %p111 = scmp.eq.s32.totalorder %s27, 1
      %p112 = por %p110, %p111
      %p113 = scmp.ne.s32.totalorder %s105, %s108
      %p114 = scmp.eq.s32.totalorder %s27, 0
      %p115 = por %p113, %p114
      %p116 = scmp.ne.s32.totalorder %s105, %s108
      %p117 = scmp.eq.s32.totalorder %s32, 1
      %p118 = por %p116, %p117
      %p119 = scmp.ne.s32.totalorder %s108, %s109
      %p120 = scmp.eq.s32.totalorder %s32, 0
      %p121 = por %p119, %p120
      %p122 = scmp.ne.s32.totalorder %s108, %s109
      %p123 = scmp.eq.s32.totalorder %s33, 1
      %p124 = por %p122, %p123
      %p126 = scmp.ne.s32.totalorder %s109, %s125
      %p127 = scmp.eq.s32.totalorder %s33, 0
      %p128 = por %p126, %p127
      %s130 = sadd.s32 %s129, 1
      %p133 = scmp.eq.s32.totalorder %s27, 1
      %p134 = scmp.ne.s32.totalorder %s129, %s131
      %p135 = scmp.eq.s32.totalorder %s27, 0
      %p136 = por %p134, %p135
      %p137 = scmp.ne.s32.totalorder %s129, %s131
      %p138 = scmp.eq.s32.totalorder %s32, 1
      %p139 = por %p137, %p138
      %p140 = scmp.ne.s32.totalorder %s131, %s132
      %p141 = scmp.eq.s32.totalorder %s32, 0
      %p142 = por %p140, %p141
      %p143 = scmp.ne.s32.totalorder %s131, %s132
      %p144 = scmp.eq.s32.totalorder %s33, 1
      %p145 = por %p143, %p144
      %p147 = scmp.ne.s32.totalorder %s132, %s146
      %p148 = scmp.eq.s32.totalorder %s33, 0
      %p149 = por %p147, %p148
      %s151 = sadd.s32 %s150, 1
      %p154 = scmp.eq.s32.totalorder %s27, 1
      %p155 = scmp.ne.s32.totalorder %s150, %s152
      %p156 = scmp.eq.s32.totalorder %s27, 0
      %p157 = por %p155, %p156
      %p158 = scmp.ne.s32.totalorder %s150, %s152
      %p159 = scmp.eq.s32.totalorder %s32, 1
      %p160 = por %p158, %p159
      %p161 = scmp.ne.s32.totalorder %s152, %s153
      %p162 = scmp.eq.s32.totalorder %s32, 0
      %p163 = por %p161, %p162
      %p164 = scmp.ne.s32.totalorder %s152, %s153
      %p165 = scmp.eq.s32.totalorder %s33, 1
      %p166 = por %p164, %p165
      %p168 = scmp.ne.s32.totalorder %s153, %s167
      %p169 = scmp.eq.s32.totalorder %s33, 0
      %p170 = por %p168, %p169
      %s172 = sadd.s32 %s171, 1
      %p175 = scmp.eq.s32.totalorder %s27, 1
      %p176 = scmp.ne.s32.totalorder %s171, %s173
      %p177 = scmp.eq.s32.totalorder %s27, 0
      %p178 = por %p176, %p177
      %p179 = scmp.ne.s32.totalorder %s171, %s173
      %p180 = scmp.eq.s32.totalorder %s32, 1
      %p181 = por %p179, %p180
      %p182 = scmp.ne.s32.totalorder %s173, %s174
      %p183 = scmp.eq.s32.totalorder %s32, 0
      %p184 = por %p182, %p183
      %p185 = scmp.ne.s32.totalorder %s173, %s174
      %p186 = scmp.eq.s32.totalorder %s33, 1
      %p187 = por %p185, %p186
      %p189 = scmp.ne.s32.totalorder %s174, %s188
      %p190 = scmp.eq.s32.totalorder %s33, 0
      %p191 = por %p189, %p190
      %s193 = sadd.s32 %s192, 1
      %p196 = scmp.eq.s32.totalorder %s27, 1
      %p197 = scmp.ne.s32.totalorder %s192, %s194
      %p198 = scmp.eq.s32.totalorder %s27, 0
      %p199 = por %p197, %p198
      %p200 = scmp.ne.s32.totalorder %s192, %s194
      %p201 = scmp.eq.s32.totalorder %s32, 1
      %p202 = por %p200, %p201
      %p203 = scmp.ne.s32.totalorder %s194, %s195
      %p204 = scmp.eq.s32.totalorder %s32, 0
      %p205 = por %p203, %p204
      %p206 = scmp.ne.s32.totalorder %s194, %s195
      %p207 = scmp.eq.s32.totalorder %s33, 1
      %p208 = por %p206, %p207
      %p210 = scmp.ne.s32.totalorder %s195, %s209
      %p211 = scmp.eq.s32.totalorder %s33, 0
      %p212 = por %p210, %p211
      %s214 = sadd.s32 %s213, 1
      %p217 = scmp.eq.s32.totalorder %s27, 1
      %p218 = scmp.ne.s32.totalorder %s213, %s215
      %p219 = scmp.eq.s32.totalorder %s27, 0
      %p220 = por %p218, %p219
      %p221 = scmp.ne.s32.totalorder %s213, %s215
      %p222 = scmp.eq.s32.totalorder %s32, 1
      %p223 = por %p221, %p222
      %p224 = scmp.ne.s32.totalorder %s215, %s216
      %p225 = scmp.eq.s32.totalorder %s32, 0
      %p226 = por %p224, %p225
      %p227 = scmp.ne.s32.totalorder %s215, %s216
      %p228 = scmp.eq.s32.totalorder %s33, 1
      %p229 = por %p227, %p228
      %p231 = scmp.ne.s32.totalorder %s216, %s230
      %p232 = scmp.eq.s32.totalorder %s33, 0
      %p233 = por %p231, %p232
      %s235 = sadd.s32 %s234, 1
      %p238 = scmp.eq.s32.totalorder %s27, 1
      %p239 = scmp.ne.s32.totalorder %s234, %s236
      %p240 = scmp.eq.s32.totalorder %s27, 0
      %p241 = por %p239, %p240
      %p242 = scmp.ne.s32.totalorder %s234, %s236
      %p243 = scmp.eq.s32.totalorder %s32, 1
      %p244 = por %p242, %p243
      %p245 = scmp.ne.s32.totalorder %s236, %s237
      %p246 = scmp.eq.s32.totalorder %s32, 0
      %p247 = por %p245, %p246
      %p248 = scmp.ne.s32.totalorder %s236, %s237
      %p249 = scmp.eq.s32.totalorder %s33, 1
      %p250 = por %p248, %p249
      %p252 = scmp.ne.s32.totalorder %s237, %s251
      %p253 = scmp.eq.s32.totalorder %s33, 0
      %p254 = por %p252, %p253
      %s256 = sadd.s32 %s255, 1
      %p259 = scmp.eq.s32.totalorder %s27, 1
      %p260 = scmp.ne.s32.totalorder %s255, %s257
      %p261 = scmp.eq.s32.totalorder %s27, 0
      %p262 = por %p260, %p261
      %p263 = scmp.ne.s32.totalorder %s255, %s257
      %p264 = scmp.eq.s32.totalorder %s32, 1
      %p265 = por %p263, %p264
      %p266 = scmp.ne.s32.totalorder %s257, %s258
      %p267 = scmp.eq.s32.totalorder %s32, 0
      %p268 = por %p266, %p267
      %p269 = scmp.ne.s32.totalorder %s257, %s258
      %p270 = scmp.eq.s32.totalorder %s33, 1
      %p271 = por %p269, %p270
      %p273 = scmp.ne.s32.totalorder %s258, %s272
      %p274 = scmp.eq.s32.totalorder %s33, 0
      %p275 = por %p273, %p274
      %s277 = sadd.s32 %s276, 1
      %p280 = scmp.eq.s32.totalorder %s27, 1
      %p281 = scmp.ne.s32.totalorder %s276, %s278
      %p282 = scmp.eq.s32.totalorder %s27, 0
      %p283 = por %p281, %p282
      %p284 = scmp.ne.s32.totalorder %s276, %s278
      %p285 = scmp.eq.s32.totalorder %s32, 1
      %p286 = por %p284, %p285
      %p287 = scmp.ne.s32.totalorder %s278, %s279
      %p288 = scmp.eq.s32.totalorder %s32, 0
      %p289 = por %p287, %p288
      %p290 = scmp.ne.s32.totalorder %s278, %s279
      %p291 = scmp.eq.s32.totalorder %s33, 1
      %p292 = por %p290, %p291
      %p294 = scmp.ne.s32.totalorder %s279, %s293
      %p295 = scmp.eq.s32.totalorder %s33, 0
      %p296 = por %p294, %p295
      %s298 = sadd.s32 %s297, 1
      %p301 = scmp.eq.s32.totalorder %s27, 1
      %p302 = scmp.ne.s32.totalorder %s297, %s299
      %p303 = scmp.eq.s32.totalorder %s27, 0
      %p304 = por %p302, %p303
      %p305 = scmp.ne.s32.totalorder %s297, %s299
      %p306 = scmp.eq.s32.totalorder %s32, 1
      %p307 = por %p305, %p306
      %p308 = scmp.ne.s32.totalorder %s299, %s300
      %p309 = scmp.eq.s32.totalorder %s32, 0
      %p310 = por %p308, %p309
      %p311 = scmp.ne.s32.totalorder %s299, %s300
      %p312 = scmp.eq.s32.totalorder %s33, 1
      %p313 = por %p311, %p312
      %p315 = scmp.ne.s32.totalorder %s300, %s314
      %p316 = scmp.eq.s32.totalorder %s33, 0
      %p317 = por %p315, %p316
      %s319 = sadd.s32 %s318, 1
      %p322 = scmp.eq.s32.totalorder %s27, 1
      %p323 = scmp.ne.s32.totalorder %s318, %s320
      %p324 = scmp.eq.s32.totalorder %s27, 0
      %p325 = por %p323, %p324
      %p326 = scmp.ne.s32.totalorder %s318, %s320
      %p327 = scmp.eq.s32.totalorder %s32, 1
      %p328 = por %p326, %p327
      %p329 = scmp.ne.s32.totalorder %s320, %s321
      %p330 = scmp.eq.s32.totalorder %s32, 0
      %p331 = por %p329, %p330
      %p332 = scmp.ne.s32.totalorder %s320, %s321
      %p333 = scmp.eq.s32.totalorder %s33, 1
      %p334 = por %p332, %p333
      %p336 = scmp.ne.s32.totalorder %s321, %s335
      %p337 = scmp.eq.s32.totalorder %s33, 0
      %p338 = por %p336, %p337
      %s340 = sadd.s32 %s339, 1
      %p343 = scmp.eq.s32.totalorder %s27, 1
      %p344 = scmp.ne.s32.totalorder %s339, %s341
      %p345 = scmp.eq.s32.totalorder %s27, 0
      %p346 = por %p344, %p345
      %p347 = scmp.ne.s32.totalorder %s339, %s341
      %p348 = scmp.eq.s32.totalorder %s32, 1
      %p349 = por %p347, %p348
      %p350 = scmp.ne.s32.totalorder %s341, %s342
      %p351 = scmp.eq.s32.totalorder %s32, 0
      %p352 = por %p350, %p351
      %p353 = scmp.ne.s32.totalorder %s341, %s342
      %p354 = scmp.eq.s32.totalorder %s33, 1
      %p355 = por %p353, %p354
      %p357 = scmp.ne.s32.totalorder %s342, %s356
      %p358 = scmp.eq.s32.totalorder %s33, 0
      %p359 = por %p357, %p358
      %s361 = sadd.s32 %s360, 1
      %p364 = scmp.eq.s32.totalorder %s27, 1
      %p365 = scmp.ne.s32.totalorder %s360, %s362
      %p366 = scmp.eq.s32.totalorder %s27, 0
      %p367 = por %p365, %p366
      %p368 = scmp.ne.s32.totalorder %s360, %s362
      %p369 = scmp.eq.s32.totalorder %s32, 1
      %p370 = por %p368, %p369
      %p371 = scmp.ne.s32.totalorder %s362, %s363
      %p372 = scmp.eq.s32.totalorder %s32, 0
      %p373 = por %p371, %p372
      %p374 = scmp.ne.s32.totalorder %s362, %s363
      %p375 = scmp.eq.s32.totalorder %s33, 1
      %p376 = por %p374, %p375
      %p378 = scmp.ne.s32.totalorder %s363, %s377
      %p379 = scmp.eq.s32.totalorder %s33, 0
      %p380 = por %p378, %p379
      %s382 = sadd.s32 %s381, 1
      %p385 = scmp.eq.s32.totalorder %s27, 1
      %p386 = scmp.ne.s32.totalorder %s381, %s383
      %p387 = scmp.eq.s32.totalorder %s27, 0
      %p388 = por %p386, %p387
      %p389 = scmp.ne.s32.totalorder %s381, %s383
      %p390 = scmp.eq.s32.totalorder %s32, 1
      %p391 = por %p389, %p390
      %p392 = scmp.ne.s32.totalorder %s383, %s384
      %p393 = scmp.eq.s32.totalorder %s32, 0
      %p394 = por %p392, %p393
      %p395 = scmp.ne.s32.totalorder %s383, %s384
      %p396 = scmp.eq.s32.totalorder %s33, 1
      %p397 = por %p395, %p396
      %p399 = scmp.ne.s32.totalorder %s384, %s398
      %p400 = scmp.eq.s32.totalorder %s33, 0
      %p401 = por %p399, %p400
      %s403 = sadd.s32 %s402, 1
      %p406 = scmp.eq.s32.totalorder %s27, 1
      %p407 = scmp.ne.s32.totalorder %s402, %s404
      %p408 = scmp.eq.s32.totalorder %s27, 0
      %p409 = por %p407, %p408
      %p410 = scmp.ne.s32.totalorder %s402, %s404
      %p411 = scmp.eq.s32.totalorder %s32, 1
      %p412 = por %p410, %p411
      %p413 = scmp.ne.s32.totalorder %s404, %s405
      %p414 = scmp.eq.s32.totalorder %s32, 0
      %p415 = por %p413, %p414
      %p416 = scmp.ne.s32.totalorder %s404, %s405
      %p417 = scmp.eq.s32.totalorder %s33, 1
      %p418 = por %p416, %p417
      %p420 = scmp.ne.s32.totalorder %s405, %s419
      %p421 = scmp.eq.s32.totalorder %s33, 0
      %p422 = por %p420, %p421
      %s424 = sadd.s32 %s423, 1
      %p427 = scmp.eq.s32.totalorder %s27, 1
      %p428 = scmp.ne.s32.totalorder %s423, %s425
      %p429 = scmp.eq.s32.totalorder %s27, 0
      %p430 = por %p428, %p429
      %p431 = scmp.ne.s32.totalorder %s423, %s425
      %p432 = scmp.eq.s32.totalorder %s32, 1
      %p433 = por %p431, %p432
      %p434 = scmp.ne.s32.totalorder %s425, %s426
      %p435 = scmp.eq.s32.totalorder %s32, 0
      %p436 = por %p434, %p435
      %p437 = scmp.ne.s32.totalorder %s425, %s426
      %p438 = scmp.eq.s32.totalorder %s33, 1
      %p439 = por %p437, %p438
      %p441 = scmp.ne.s32.totalorder %s426, %s440
      %p442 = scmp.eq.s32.totalorder %s33, 0
      %p443 = por %p441, %p442
      %s444 = ssub.s32 %s34, %s46
      %s445 = ssub.s32 %s35, %s42
      %s446 = sor.u32 %s444, %s445
      %p447 = scmp.eq.s32.totalorder %s446, 0
      %s449 = sadd.s32 %s448, 1
      %s450 = scalar_select %p447, %s448, %s449
      %p453 = pneg %p447
      %p454 = scmp.eq.s32.totalorder %s27, 1
      %p455 = por %p453, %p454
      %p456 = scmp.ne.s32.totalorder %s448, %s451
      %p457 = scmp.eq.s32.totalorder %s27, 0
      %p458 = por %p456, %p457
      %p459 = scmp.ne.s32.totalorder %s448, %s451
      %p460 = scmp.eq.s32.totalorder %s32, 1
      %p461 = por %p459, %p460
      %p462 = scmp.ne.s32.totalorder %s451, %s452
      %p463 = scmp.eq.s32.totalorder %s32, 0
      %p464 = por %p462, %p463
      %p465 = scmp.ne.s32.totalorder %s451, %s452
      %p466 = scmp.eq.s32.totalorder %s33, 1
      %p467 = por %p465, %p466
      %p469 = scmp.ne.s32.totalorder %s452, %s468
      %p470 = scmp.eq.s32.totalorder %s33, 0
      %p471 = por %p469, %p470
      %p472 = scmp.le.s32.totalorder 1, %s27
      %p473 = scmp.lt.s32.totalorder %s27, 3
      %p474 = pnand %p472, %p473
      %p475 = pneg %p474
      // Predicated region
      $region9: #{mae_forward.1} parent=5 // pred_check
        _
      $region10: #{mae_forward.1} parent=5 // pred_check_branch
        %477 = sbr.rel (%p474) target = $region12
      $region11: #{mae_forward.1} parent=5 // pred_region
        %s478 = ssub.s32 %s27, 1
        // Predicated region
        $region13: #{mae_forward.1} parent=11 // pred_check
          %p479 = pneg %p93
        $region14: #{mae_forward.1} parent=11 // pred_check_branch
          %481 = sbr.rel (%p479) target = $region16
        $region15: #{mae_forward.1} parent=11 // pred_region
          %s482 = smul.u32 2, %s37
          %p483 = scmp.lt.s32.totalorder %s482, 1
          %s484 = scalar_select %p483, %s482, 1
          %s485 = smul.addr %s484, 8
          %s486 = scalar_lea.vmem %s1, %s485
          %s487 = smul.u32 2, %s37
        $region16: #{mae_forward.1} parent=11 // pred_fallthru
          _
        // Predicated region
        $region17: #{mae_forward.1} parent=11 // pred_check
          %p488 = pneg %p142
        $region18: #{mae_forward.1} parent=11 // pred_check_branch
          %490 = sbr.rel (%p488) target = $region20
        $region19: #{mae_forward.1} parent=11 // pred_region
          _
        $region20: #{mae_forward.1} parent=11 // pred_fallthru
          _
        // Predicated region
        $region21: #{mae_forward.1} parent=11 // pred_check
          %p491 = pneg %p163
        $region22: #{mae_forward.1} parent=11 // pred_check_branch
          %493 = sbr.rel (%p491) target = $region24
        $region23: #{mae_forward.1} parent=11 // pred_region
          _
        $region24: #{mae_forward.1} parent=11 // pred_fallthru
          _
        // Predicated region
        $region25: #{mae_forward.1} parent=11 // pred_check
          %p494 = pneg %p184
        $region26: #{mae_forward.1} parent=11 // pred_check_branch
          %496 = sbr.rel (%p494) target = $region28
        $region27: #{mae_forward.1} parent=11 // pred_region
          _
        $region28: #{mae_forward.1} parent=11 // pred_fallthru
          _
        // Predicated region
        $region29: #{mae_forward.1} parent=11 // pred_check
          %p497 = pneg %p205
        $region30: #{mae_forward.1} parent=11 // pred_check_branch
          %499 = sbr.rel (%p497) target = $region32
        $region31: #{mae_forward.1} parent=11 // pred_region
          _
        $region32: #{mae_forward.1} parent=11 // pred_fallthru
          _
        // Predicated region
        $region33: #{mae_forward.1} parent=11 // pred_check
          %p500 = pneg %p226
        $region34: #{mae_forward.1} parent=11 // pred_check_branch
          %502 = sbr.rel (%p500) target = $region36
        $region35: #{mae_forward.1} parent=11 // pred_region
          _
        $region36: #{mae_forward.1} parent=11 // pred_fallthru
          _
        // Predicated region
        $region37: #{mae_forward.1} parent=11 // pred_check
          %p503 = pneg %p247
        $region38: #{mae_forward.1} parent=11 // pred_check_branch
          %505 = sbr.rel (%p503) target = $region40
        $region39: #{mae_forward.1} parent=11 // pred_region
          _
        $region40: #{mae_forward.1} parent=11 // pred_fallthru
          _
        // Predicated region
        $region41: #{mae_forward.1} parent=11 // pred_check
          %p506 = pneg %p268
        $region42: #{mae_forward.1} parent=11 // pred_check_branch
          %508 = sbr.rel (%p506) target = $region44
        $region43: #{mae_forward.1} parent=11 // pred_region
          _
        $region44: #{mae_forward.1} parent=11 // pred_fallthru
          _
        // Predicated region
        $region45: #{mae_forward.1} parent=11 // pred_check
          %p509 = pneg %p289
        $region46: #{mae_forward.1} parent=11 // pred_check_branch
          %511 = sbr.rel (%p509) target = $region48
        $region47: #{mae_forward.1} parent=11 // pred_region
          _
        $region48: #{mae_forward.1} parent=11 // pred_fallthru
          _
        // Predicated region
        $region49: #{mae_forward.1} parent=11 // pred_check
          %p512 = pneg %p310
        $region50: #{mae_forward.1} parent=11 // pred_check_branch
          %514 = sbr.rel (%p512) target = $region52
        $region51: #{mae_forward.1} parent=11 // pred_region
          _
        $region52: #{mae_forward.1} parent=11 // pred_fallthru
          _
        // Predicated region
        $region53: #{mae_forward.1} parent=11 // pred_check
          %p515 = pneg %p331
        $region54: #{mae_forward.1} parent=11 // pred_check_branch
          %517 = sbr.rel (%p515) target = $region56
        $region55: #{mae_forward.1} parent=11 // pred_region
          _
        $region56: #{mae_forward.1} parent=11 // pred_fallthru
          _
        // Predicated region
        $region57: #{mae_forward.1} parent=11 // pred_check
          %p518 = pneg %p352
        $region58: #{mae_forward.1} parent=11 // pred_check_branch
          %520 = sbr.rel (%p518) target = $region60
        $region59: #{mae_forward.1} parent=11 // pred_region
          _
        $region60: #{mae_forward.1} parent=11 // pred_fallthru
          _
        // Predicated region
        $region61: #{mae_forward.1} parent=11 // pred_check
          %p521 = pneg %p373
        $region62: #{mae_forward.1} parent=11 // pred_check_branch
          %523 = sbr.rel (%p521) target = $region64
        $region63: #{mae_forward.1} parent=11 // pred_region
          _
        $region64: #{mae_forward.1} parent=11 // pred_fallthru
          _
        // Predicated region
        $region65: #{mae_forward.1} parent=11 // pred_check
          %p524 = pneg %p394
        $region66: #{mae_forward.1} parent=11 // pred_check_branch
          %526 = sbr.rel (%p524) target = $region68
        $region67: #{mae_forward.1} parent=11 // pred_region
          _
        $region68: #{mae_forward.1} parent=11 // pred_fallthru
          _
        // Predicated region
        $region69: #{mae_forward.1} parent=11 // pred_check
          %p527 = pneg %p415
        $region70: #{mae_forward.1} parent=11 // pred_check_branch
          %529 = sbr.rel (%p527) target = $region72
        $region71: #{mae_forward.1} parent=11 // pred_region
          _
        $region72: #{mae_forward.1} parent=11 // pred_fallthru
          _
        // Predicated region
        $region73: #{mae_forward.1} parent=11 // pred_check
          %p530 = pneg %p436
        $region74: #{mae_forward.1} parent=11 // pred_check_branch
          %532 = sbr.rel (%p530) target = $region76
        $region75: #{mae_forward.1} parent=11 // pred_region
          _
        $region76: #{mae_forward.1} parent=11 // pred_fallthru
          _
      $region12: #{mae_forward.1} parent=5 // pred_fallthru
        _
      %p533 = scmp.lt.s32.totalorder %s27, 2
      // Predicated region
      $region77: #{mae_forward.1} parent=5 // pred_check
        %p534 = pneg %p533
      $region78: #{mae_forward.1} parent=5 // pred_check_branch
        %536 = sbr.rel (%p534) target = $region80
      $region79: #{mae_forward.1} parent=5 // pred_region
        // Predicated region
        $region81: #{mae_forward.1} parent=79 // pred_check
          %p537 = pneg %p61
        $region82: #{mae_forward.1} parent=79 // pred_check_branch
          %539 = sbr.rel (%p537) target = $region84
        $region83: #{mae_forward.1} parent=79 // pred_region
          %s540 = smul.u32 2, %s35
          %p541 = scmp.lt.s32.totalorder %s34, 1
          %s542 = scalar_select %p541, %s34, 1
          %p543 = scmp.lt.s32.totalorder %s540, 1
          %s544 = scalar_select %p543, %s540, 1
          %s545 = smul.addr %s542, 2
          %s546 = sadd.s32 %s544, %s545
          %s547 = smul.addr %s546, 8
          %s548 = scalar_lea.vmem %s0, %s547
          %s549 = smul.u32 2, %s35
        $region84: #{mae_forward.1} parent=79 // pred_fallthru
          _
        // Predicated region
        $region85: #{mae_forward.1} parent=79 // pred_check
          %p550 = pneg %p115
        $region86: #{mae_forward.1} parent=79 // pred_check_branch
          %552 = sbr.rel (%p550) target = $region88
        $region87: #{mae_forward.1} parent=79 // pred_region
          %s553 = smul.u32 2, %s35
          %p554 = scmp.lt.s32.totalorder %s34, 1
          %s555 = scalar_select %p554, %s34, 1
          %p556 = scmp.lt.s32.totalorder %s553, 1
          %s557 = scalar_select %p556, %s553, 1
          %s558 = smul.addr %s555, 2
          %s559 = sadd.s32 %s557, %s558
          %s560 = smul.addr %s559, 8
          %s561 = scalar_lea.vmem %s2, %s560
          %s562 = smul.u32 2, %s35
        $region88: #{mae_forward.1} parent=79 // pred_fallthru
          _
      $region80: #{mae_forward.1} parent=5 // pred_fallthru
        _
      %p563 = scmp.le.s32.totalorder 1, %s27
      %p564 = scmp.lt.s32.totalorder %s27, 3
      %p565 = pnand %p563, %p564
      %p566 = pneg %p565
      // Predicated region
      $region89: #{mae_forward.1} parent=5 // pred_check
        _
      $region90: #{mae_forward.1} parent=5 // pred_check_branch
        %568 = sbr.rel (%p565) target = $region92
      $region91: #{mae_forward.1} parent=5 // pred_region
        %s569 = ssub.s32 %s27, 1
        %s570 = smul.u32 2, %s37
        %p571 = scmp.lt.s32.totalorder %s36, 1
        %s572 = scalar_select %p571, %s36, 1
        %p573 = scmp.lt.s32.totalorder %s570, 1
        %s574 = scalar_select %p573, %s570, 1
        %s575 = smul.addr %s572, 2
        %s576 = sadd.s32 %s574, %s575
        %s577 = smul.addr %s576, 8
        %s578 = scalar_lea.vmem %s0, %s577
        %p579 = pneg %p67
        %p580 = pneg %p64
        %s581 = smul.u32 2, %s37
        %p582 = scmp.lt.s32.totalorder %s581, 1
        %s583 = scalar_select %p582, %s581, 1
        %s584 = smul.addr %s583, 8
        %s585 = scalar_lea.vmem %s1, %s584
        %p586 = pneg %p93
        %p587 = pneg %p90
        %s588 = smul.u32 2, %s37
        %p589 = scmp.lt.s32.totalorder %s36, 1
        %s590 = scalar_select %p589, %s36, 1
        %p591 = scmp.lt.s32.totalorder %s588, 1
        %s592 = scalar_select %p591, %s588, 1
        %s593 = smul.addr %s590, 2
        %s594 = sadd.s32 %s592, %s593
        %s595 = smul.addr %s594, 8
        %s596 = scalar_lea.vmem %s2, %s595
        %p597 = pneg %p121
        %p598 = pneg %p118
        %p599 = pneg %p142
        %p600 = pneg %p139
        %p601 = pneg %p163
        %p602 = pneg %p160
        %p603 = pneg %p184
        %p604 = pneg %p181
        %p605 = pneg %p205
        %p606 = pneg %p202
        %p607 = pneg %p226
        %p608 = pneg %p223
        %p609 = pneg %p247
        %p610 = pneg %p244
        %p611 = pneg %p268
        %p612 = pneg %p265
        %p613 = pneg %p289
        %p614 = pneg %p286
        %p615 = pneg %p310
        %p616 = pneg %p307
        %p617 = pneg %p331
        %p618 = pneg %p328
        %p619 = pneg %p352
        %p620 = pneg %p349
        %p621 = pneg %p373
        %p622 = pneg %p370
        %p623 = pneg %p394
        %p624 = pneg %p391
        %p625 = pneg %p415
        %p626 = pneg %p412
        %p627 = pneg %p436
        %p628 = pneg %p433
        %p629 = pneg %p464
        %p630 = pneg %p461
        %s631 = sand.u32 %s451, 1
        %s632 = scalar_lea.sflag [#allocation3], %s631
        %s633 = sand.u32 %s451, 1
        %s634 = smul.addr %s633, 16
        %s635 = scalar_lea.vmem [#allocation2], %s634
        %s636 = smul.u32 2, %s37
        %p637 = scmp.lt.s32.totalorder %s36, 1
        %s638 = scalar_select %p637, %s36, 1
        %p639 = scmp.lt.s32.totalorder %s636, 1
        %s640 = scalar_select %p639, %s636, 1
        %s641 = smul.addr %s638, 2
        %s642 = sadd.s32 %s640, %s641
        %s643 = smul.addr %s642, 8
        %s644 = scalar_lea.vmem %s0, %s643
        %s645 = smul.u32 2, %s37
        %s646 = smul.u32 2, %s37
        %p647 = scmp.lt.s32.totalorder %s646, 1
        %s648 = scalar_select %p647, %s646, 1
        %s649 = smul.addr %s648, 8
        %s650 = scalar_lea.vmem %s1, %s649
        %s651 = smul.u32 2, %s37
        %s652 = smul.u32 2, %s37
        %p653 = scmp.lt.s32.totalorder %s36, 1
        %s654 = scalar_select %p653, %s36, 1
        %p655 = scmp.lt.s32.totalorder %s652, 1
        %s656 = scalar_select %p655, %s652, 1
        %s657 = smul.addr %s654, 2
        %s658 = sadd.s32 %s656, %s657
        %s659 = smul.addr %s658, 8
        %s660 = scalar_lea.vmem %s2, %s659
        %s661 = smul.u32 2, %s37
        %s662 = smul.u32 2, %s37
        %v664 = vld [vmem:[%s644] sm:$0xff]
        %v665 = vld [vmem:[%s644 + $0x8] sm:$0xff]
        %v666 = vpack.c.bf16 %v665, %v664
        %v667 = vld [vmem:[%s650] sm:$0xff]
        %v668 = vld [vmem:[%s650 + $0x8] sm:$0xff]
        %v669 = vld [vmem:[%s660] sm:$0xff]
        %v670 = vld [vmem:[%s660 + $0x8] sm:$0xff]
        %v671 = vld [vmem:[%s3] sm:$0xf]
        %v672 = vld [vmem:[%s3 + $0x4] sm:$0xf]
        %v673 = vld [vmem:[%s3 + $0x8] sm:$0xf]
        %v674 = vld [vmem:[%s3 + $0xc] sm:$0xf]
        %v675 = vld [vmem:[%s3 + $0x10] sm:$0xf]
        %v676 = vld [vmem:[%s3 + $0x14] sm:$0xf]
        %v677 = vld [vmem:[%s4] sm:$0x1]
        %v679 = vlaneseq
        %v680 = vshrl.u32 %v679, 7
        %v681 = vsub.s32 0, %v680
        %v682 = vrot.slane %v677, %v681
        %v690 = vunpack.c.l.b16 %v671
        %v691 = vunpack.c.l.b16 %v672
        %v692 = vunpack.c.l.b16 %v673
        %v693 = vunpack.c.l.b16 %v674
        %v694 = vunpack.c.l.b16 %v675
        %v695 = vunpack.c.l.b16 %v676
        %v696 = vpack.c.b16 %v691, %v690
        %v697 = vpack.c.b16 %v693, %v692
        %v698 = vpack.c.b16 %v695, %v694
        %vm702 = vcmask 392192
        %v704 = vsel %vm702, %v666, 0
        %706 = vmatprep.subr.bf16.mxu0 0
        %707 = vmatpush1.bf16.msra.mxu0 0
        %708 = vmatprep.subr.bf16.mxu0 0
        %709 = vmatpush1.bf16.msra.mxu0 0
        %710 = vmatprep.subr.bf16.mxu0 0
        %711 = vmatpush1.bf16.msra.mxu0 0
        %712 = vmatprep.subr.bf16.mxu0 0
        %713 = vmatpush1.bf16.msra.mxu0 0
        %714 = vmatprep.subr.bf16.mxu0 0
        %715 = vmatpush1.bf16.msra.mxu0 0
        %716 = vmatprep.subr.bf16.mxu0 0
        %717 = vmatpush1.bf16.msra.mxu0 %v698
        %718 = vmatprep.subr.bf16.mxu0 0
        %719 = vmatpush1.bf16.msra.mxu0 %v697
        %720 = vmatprep.subr.bf16.mxu0 0
        %721 = vmatpush1.bf16.msra.mxu0 %v696
        %722 = vmatprep.subr.bf16.mxu0 0
        %723 = vmatpush2.bf16.msra.mxu0 0
        %724 = vmatprep.subr.bf16.mxu0 0
        %725 = vmatpush2.bf16.msra.mxu0 0
        %726 = vmatprep.subr.bf16.mxu0 0
        %727 = vmatpush2.bf16.msra.mxu0 0
        %728 = vmatprep.subr.bf16.mxu0 0
        %729 = vmatpush2.bf16.msra.mxu0 0
        %730 = vmatprep.subr.bf16.mxu0 0
        %731 = vmatpush2.bf16.msra.mxu0 0
        %732 = vmatprep.subr.bf16.mxu0 0
        %733 = vmatpush2.bf16.msra.mxu0 0
        %734 = vmatprep.subr.bf16.mxu0 0
        %735 = vmatpush2.bf16.msra.mxu0 0
        %736 = vmatprep.subr.bf16.mxu0 0
        %737 = vmatpush2.bf16.msra.mxu0 0
        %738 = vmatprep.mubr.bf16.mxu0 0
        %739 = vmatmul.mubr.bf16.gmra.mxu0 %v704
        %v740 = vpop.f32.mrf.mxu0
        %v741 = vadd.f32 %v682, %v740
        %v742 = vpop.f32.mrf.mxu0
        %v743 = vpop.f32.mrf.mxu0
        %v744 = vadd.f32 %v682, %v743
        %v745 = vpop.f32.mrf.mxu0
        %746 = vdwg.mxu0
        %v747 = vadd.f32 %v741, %v667
        %v748 = vadd.f32 %v744, %v668
        %v749 = vld [vmem:[%s6] sm:$0x1]
        %v750 = vld [vmem:[%s7] sm:$0x1]
        %751 = vadd.xlane.f32.xlu0 %v747
        %v752 = vpop.xlane.xlu0 %751
        %753 = vadd.xlane.f32.xlu0 %v748
        %v754 = vpop.xlane.xlu0 %753
        %v755 = vmul.f32 %v752, 0.03125
        %v756 = vmul.f32 %v754, 0.03125
        %v757 = vmul.f32 %v747, %v747
        %v758 = vmul.f32 %v748, %v748
        %759 = vadd.xlane.f32.xlu0 %v757
        %v760 = vpop.xlane.xlu0 %759
        %761 = vadd.xlane.f32.xlu0 %v758
        %v762 = vpop.xlane.xlu0 %761
        %v763 = vmul.f32 %v760, 0.03125
        %v764 = vmul.f32 %v762, 0.03125
        %v765 = vmul.f32 %v755, %v755
        %v766 = vmul.f32 %v756, %v756
        %v767 = vsub.f32 %v763, %v765
        %v768 = vsub.f32 %v764, %v766
        %v769 = vmax.f32 %v767, 0.0
        %v770 = vmax.f32 %v768, 0.0
        %v771 = vsub.f32 %v747, %v755
        %v772 = vsub.f32 %v748, %v756
        %v773 = vadd.f32 %v769, 1e-05
        %v774 = vadd.f32 %v770, 1e-05
        %v775 = vrsqrt.pop %v773
        %v776 = vrsqrt.pop %v774
        %v777 = vmul.f32 %v771, %v775
        %v778 = vmul.f32 %v772, %v776
        %v780 = vlaneseq
        %v781 = vshrl.u32 %v780, 7
        %v782 = vsub.s32 0, %v781
        %v783 = vrot.slane %v749, %v782
        %v785 = vmul.f32 %v777, %v783
        %v786 = vmul.f32 %v778, %v783
        %v788 = vlaneseq
        %v789 = vshrl.u32 %v788, 7
        %v790 = vsub.s32 0, %v789
        %v791 = vrot.slane %v750, %v790
        %v793 = vadd.f32 %v785, %v791
        %v794 = vadd.f32 %v786, %v791
        %v795 = vpack.c.bf16 %v794, %v793
        %v796 = vld [vmem:[%s8] sm:$0xf]
        %v797 = vld [vmem:[%s8 + $0x4] sm:$0xf]
        %v798 = vld [vmem:[%s8 + $0x8] sm:$0xf]
        %v799 = vld [vmem:[%s8 + $0xc] sm:$0xf]
        %v800 = vld [vmem:[%s8 + $0x10] sm:$0xf]
        %v801 = vld [vmem:[%s8 + $0x14] sm:$0xf]
        %v802 = vld [vmem:[%s8 + $0x18] sm:$0xf]
        %v803 = vld [vmem:[%s8 + $0x1c] sm:$0xf]
        %v804 = vld [vmem:[%s8 + $0x20] sm:$0xf]
        %v805 = vld [vmem:[%s8 + $0x24] sm:$0xf]
        %v806 = vld [vmem:[%s8 + $0x28] sm:$0xf]
        %v807 = vld [vmem:[%s8 + $0x2c] sm:$0xf]
        %v808 = vld [vmem:[%s8 + $0x30] sm:$0xf]
        %v809 = vld [vmem:[%s8 + $0x34] sm:$0xf]
        %v810 = vld [vmem:[%s8 + $0x38] sm:$0xf]
        %v811 = vld [vmem:[%s8 + $0x3c] sm:$0xf]
        %v812 = vld [vmem:[%s9] sm:$0x1]
        %v814 = vlaneseq
        %v815 = vshrl.u32 %v814, 7
        %v816 = vsub.s32 0, %v815
        %v817 = vrot.slane %v812, %v816
        %v835 = vunpack.c.l.b16 %v796
        %v836 = vunpack.c.l.b16 %v797
        %v837 = vunpack.c.l.b16 %v798
        %v838 = vunpack.c.l.b16 %v799
        %v839 = vunpack.c.l.b16 %v800
        %v840 = vunpack.c.l.b16 %v801
        %v841 = vunpack.c.l.b16 %v802
        %v842 = vunpack.c.l.b16 %v803
        %v843 = vunpack.c.l.b16 %v804
        %v844 = vunpack.c.l.b16 %v805
        %v845 = vunpack.c.l.b16 %v806
        %v846 = vunpack.c.l.b16 %v807
        %v847 = vunpack.c.l.b16 %v808
        %v848 = vunpack.c.l.b16 %v809
        %v849 = vunpack.c.l.b16 %v810
        %v850 = vunpack.c.l.b16 %v811
        %v851 = vpack.c.b16 %v836, %v835
        %v852 = vpack.c.b16 %v838, %v837
        %v853 = vpack.c.b16 %v840, %v839
        %v854 = vpack.c.b16 %v842, %v841
        %v855 = vpack.c.b16 %v844, %v843
        %v856 = vpack.c.b16 %v846, %v845
        %v857 = vpack.c.b16 %v848, %v847
        %v858 = vpack.c.b16 %v850, %v849
        %867 = vmatprep.subr.bf16.mxu0 0
        %868 = vmatpush1.bf16.msra.mxu0 %v858
        %869 = vmatprep.subr.bf16.mxu0 0
        %870 = vmatpush1.bf16.msra.mxu0 %v857
        %871 = vmatprep.subr.bf16.mxu0 0
        %872 = vmatpush1.bf16.msra.mxu0 %v856
        %873 = vmatprep.subr.bf16.mxu0 0
        %874 = vmatpush1.bf16.msra.mxu0 %v855
        %875 = vmatprep.subr.bf16.mxu0 0
        %876 = vmatpush1.bf16.msra.mxu0 %v854
        %877 = vmatprep.subr.bf16.mxu0 0
        %878 = vmatpush1.bf16.msra.mxu0 %v853
        %879 = vmatprep.subr.bf16.mxu0 0
        %880 = vmatpush1.bf16.msra.mxu0 %v852
        %881 = vmatprep.subr.bf16.mxu0 0
        %882 = vmatpush1.bf16.msra.mxu0 %v851
        %883 = vmatprep.subr.bf16.mxu0 0
        %884 = vmatpush2.bf16.msra.mxu0 0
        %885 = vmatprep.subr.bf16.mxu0 0
        %886 = vmatpush2.bf16.msra.mxu0 0
        %887 = vmatprep.subr.bf16.mxu0 0
        %888 = vmatpush2.bf16.msra.mxu0 0
        %889 = vmatprep.subr.bf16.mxu0 0
        %890 = vmatpush2.bf16.msra.mxu0 0
        %891 = vmatprep.subr.bf16.mxu0 0
        %892 = vmatpush2.bf16.msra.mxu0 0
        %893 = vmatprep.subr.bf16.mxu0 0
        %894 = vmatpush2.bf16.msra.mxu0 0
        %895 = vmatprep.subr.bf16.mxu0 0
        %896 = vmatpush2.bf16.msra.mxu0 0
        %897 = vmatprep.subr.bf16.mxu0 0
        %898 = vmatpush2.bf16.msra.mxu0 0
        %899 = vmatprep.mubr.bf16.mxu0 0
        %900 = vmatmul.mubr.bf16.gmra.mxu0 %v795
        %v901 = vpop.f32.mrf.mxu0
        %v902 = vadd.f32 %v817, %v901
        %v903 = vpop.f32.mrf.mxu0
        %v904 = vpop.f32.mrf.mxu0
        %v905 = vadd.f32 %v817, %v904
        %v906 = vpop.f32.mrf.mxu0
        %907 = vdwg.mxu0
        %v908 = vmul.f32 %v902, %v902
        %v909 = vmul.f32 %v905, %v905
        %v910 = vmul.f32 %v902, %v908
        %v911 = vmul.f32 %v905, %v909
        %v912 = vmul.f32 %v910, 0.044715
        %v913 = vmul.f32 %v911, 0.044715
        %v914 = vadd.f32 %v902, %v912
        %v915 = vadd.f32 %v905, %v913
        %v916 = vmul.f32 %v914, 0.7978846
        %v917 = vmul.f32 %v915, 0.7978846
        %v918 = vtanh.pop %v916
        %v919 = vtanh.pop %v917
        %v920 = vadd.f32 %v918, 1.0
        %v921 = vadd.f32 %v919, 1.0
        %v922 = vmul.f32 %v920, 0.5
        %v923 = vmul.f32 %v921, 0.5
        %v924 = vmul.f32 %v902, %v922
        %v925 = vmul.f32 %v905, %v923
        %v926 = vpack.c.bf16 %v925, %v924
        %v927 = vld [vmem:[%s10] sm:$0xf]
        %v928 = vld [vmem:[%s10 + $0x4] sm:$0xf]
        %v929 = vld [vmem:[%s10 + $0x8] sm:$0xf]
        %v930 = vld [vmem:[%s10 + $0xc] sm:$0xf]
        %v931 = vld [vmem:[%s10 + $0x10] sm:$0xf]
        %v932 = vld [vmem:[%s10 + $0x14] sm:$0xf]
        %v933 = vld [vmem:[%s10 + $0x18] sm:$0xf]
        %v934 = vld [vmem:[%s10 + $0x1c] sm:$0xf]
        %v935 = vld [vmem:[%s10 + $0x20] sm:$0xf]
        %v936 = vld [vmem:[%s10 + $0x24] sm:$0xf]
        %v937 = vld [vmem:[%s10 + $0x28] sm:$0xf]
        %v938 = vld [vmem:[%s10 + $0x2c] sm:$0xf]
        %v939 = vld [vmem:[%s10 + $0x30] sm:$0xf]
        %v940 = vld [vmem:[%s10 + $0x34] sm:$0xf]
        %v941 = vld [vmem:[%s10 + $0x38] sm:$0xf]
        %v942 = vld [vmem:[%s10 + $0x3c] sm:$0xf]
        %v959 = vunpack.c.l.b16 %v927
        %v960 = vunpack.c.l.b16 %v928
        %v961 = vunpack.c.l.b16 %v929
        %v962 = vunpack.c.l.b16 %v930
        %v963 = vunpack.c.l.b16 %v931
        %v964 = vunpack.c.l.b16 %v932
        %v965 = vunpack.c.l.b16 %v933
        %v966 = vunpack.c.l.b16 %v934
        %v967 = vunpack.c.l.b16 %v935
        %v968 = vunpack.c.l.b16 %v936
        %v969 = vunpack.c.l.b16 %v937
        %v970 = vunpack.c.l.b16 %v938
        %v971 = vunpack.c.l.b16 %v939
        %v972 = vunpack.c.l.b16 %v940
        %v973 = vunpack.c.l.b16 %v941
        %v974 = vunpack.c.l.b16 %v942
        %v975 = vpack.c.b16 %v960, %v959
        %v976 = vpack.c.b16 %v962, %v961
        %v977 = vpack.c.b16 %v964, %v963
        %v978 = vpack.c.b16 %v966, %v965
        %v979 = vpack.c.b16 %v968, %v967
        %v980 = vpack.c.b16 %v970, %v969
        %v981 = vpack.c.b16 %v972, %v971
        %v982 = vpack.c.b16 %v974, %v973
        %991 = vmatprep.subr.bf16.mxu0 0
        %992 = vmatpush1.bf16.msra.mxu0 %v982
        %993 = vmatprep.subr.bf16.mxu0 0
        %994 = vmatpush1.bf16.msra.mxu0 %v981
        %995 = vmatprep.subr.bf16.mxu0 0
        %996 = vmatpush1.bf16.msra.mxu0 %v980
        %997 = vmatprep.subr.bf16.mxu0 0
        %998 = vmatpush1.bf16.msra.mxu0 %v979
        %999 = vmatprep.subr.bf16.mxu0 0
        %1000 = vmatpush1.bf16.msra.mxu0 %v978
        %1001 = vmatprep.subr.bf16.mxu0 0
        %1002 = vmatpush1.bf16.msra.mxu0 %v977
        %1003 = vmatprep.subr.bf16.mxu0 0
        %1004 = vmatpush1.bf16.msra.mxu0 %v976
        %1005 = vmatprep.subr.bf16.mxu0 0
        %1006 = vmatpush1.bf16.msra.mxu0 %v975
        %1007 = vmatprep.subr.bf16.mxu0 0
        %1008 = vmatpush2.bf16.msra.mxu0 0
        %1009 = vmatprep.subr.bf16.mxu0 0
        %1010 = vmatpush2.bf16.msra.mxu0 0
        %1011 = vmatprep.subr.bf16.mxu0 0
        %1012 = vmatpush2.bf16.msra.mxu0 0
        %1013 = vmatprep.subr.bf16.mxu0 0
        %1014 = vmatpush2.bf16.msra.mxu0 0
        %1015 = vmatprep.subr.bf16.mxu0 0
        %1016 = vmatpush2.bf16.msra.mxu0 0
        %1017 = vmatprep.subr.bf16.mxu0 0
        %1018 = vmatpush2.bf16.msra.mxu0 0
        %1019 = vmatprep.subr.bf16.mxu0 0
        %1020 = vmatpush2.bf16.msra.mxu0 0
        %1021 = vmatprep.subr.bf16.mxu0 0
        %1022 = vmatpush2.bf16.msra.mxu0 0
        %1023 = vmatprep.mubr.bf16.mxu0 0
        %1024 = vmatmul.mubr.bf16.gmra.mxu0 %v926
        %v1025 = vpop.f32.mrf.mxu0
        %v1026 = vadd.f32 0.0, %v1025
        %v1027 = vpop.f32.mrf.mxu0
        %v1028 = vpop.f32.mrf.mxu0
        %v1029 = vadd.f32 0.0, %v1028
        %v1030 = vpop.f32.mrf.mxu0
        %1031 = vdwg.mxu0
        %v1032 = vadd.f32 %v747, %v1026
        %v1033 = vadd.f32 %v748, %v1029
        %v1034 = vld [vmem:[%s11] sm:$0x1]
        %v1036 = vlaneseq
        %v1037 = vshrl.u32 %v1036, 7
        %v1038 = vsub.s32 0, %v1037
        %v1039 = vrot.slane %v1034, %v1038
        %v1041 = vadd.f32 %v1032, %v1039
        %v1042 = vadd.f32 %v1033, %v1039
        %v1043 = vld [vmem:[%s5] sm:$0x1]
        %v1045 = vlaneseq
        %v1046 = vshrl.u32 %v1045, 7
        %v1047 = vsub.s32 0, %v1046
        %v1048 = vrot.slane %v1043, %v1047
        %v1050 = vadd.f32 %v1048, %v667
        %v1051 = vadd.f32 %v1048, %v668
        %v1052 = vadd.f32 %v1041, %v667
        %v1053 = vadd.f32 %v1042, %v668
        %v1054 = vsub.f32 %v1052, %v1050
        %v1055 = vsub.f32 %v1053, %v1051
        %1057 = vset.pattern.permute.xlu0 0
        %1058 = vperm.xlu0 %1057, %v669
        %v1059 = vpop.permute.xlu0 %1058
        %1062 = vset.pattern.permute.xlu0 0
        %1063 = vperm.xlu0 %1062, %v670
        %v1064 = vpop.permute.xlu0 %1063
        %v1066 = vmul.f32 %v1059, %v1054
        %v1067 = vmul.f32 %v1064, %v1055
        %v1068 = vadd.f32 %v1050, %v1066
        %v1069 = vadd.f32 %v1051, %v1067
        %v1070 = vld [vmem:[%s12] sm:$0x1]
        %v1071 = vld [vmem:[%s13] sm:$0x1]
        %1072 = vadd.xlane.f32.xlu0 %v1068
        %v1073 = vpop.xlane.xlu0 %1072
        %1074 = vadd.xlane.f32.xlu0 %v1069
        %v1075 = vpop.xlane.xlu0 %1074
        %v1076 = vmul.f32 %v1073, 0.03125
        %v1077 = vmul.f32 %v1075, 0.03125
        %v1078 = vmul.f32 %v1068, %v1068
        %v1079 = vmul.f32 %v1069, %v1069
        %1080 = vadd.xlane.f32.xlu0 %v1078
        %v1081 = vpop.xlane.xlu0 %1080
        %1082 = vadd.xlane.f32.xlu0 %v1079
        %v1083 = vpop.xlane.xlu0 %1082
        %v1084 = vmul.f32 %v1081, 0.03125
        %v1085 = vmul.f32 %v1083, 0.03125
        %v1086 = vmul.f32 %v1076, %v1076
        %v1087 = vmul.f32 %v1077, %v1077
        %v1088 = vsub.f32 %v1084, %v1086
        %v1089 = vsub.f32 %v1085, %v1087
        %v1090 = vmax.f32 %v1088, 0.0
        %v1091 = vmax.f32 %v1089, 0.0
        %v1092 = vsub.f32 %v1068, %v1076
        %v1093 = vsub.f32 %v1069, %v1077
        %v1094 = vadd.f32 %v1090, 1e-05
        %v1095 = vadd.f32 %v1091, 1e-05
        %v1096 = vrsqrt.pop %v1094
        %v1097 = vrsqrt.pop %v1095
        %v1098 = vmul.f32 %v1092, %v1096
        %v1099 = vmul.f32 %v1093, %v1097
        %v1101 = vlaneseq
        %v1102 = vshrl.u32 %v1101, 7
        %v1103 = vsub.s32 0, %v1102
        %v1104 = vrot.slane %v1070, %v1103
        %v1106 = vmul.f32 %v1098, %v1104
        %v1107 = vmul.f32 %v1099, %v1104
        %v1109 = vlaneseq
        %v1110 = vshrl.u32 %v1109, 7
        %v1111 = vsub.s32 0, %v1110
        %v1112 = vrot.slane %v1071, %v1111
        %v1114 = vadd.f32 %v1106, %v1112
        %v1115 = vadd.f32 %v1107, %v1112
        %v1116 = vpack.c.bf16 %v1115, %v1114
        %v1117 = vld [vmem:[%s14] sm:$0xf]
        %v1118 = vld [vmem:[%s14 + $0x4] sm:$0xf]
        %v1119 = vld [vmem:[%s14 + $0x8] sm:$0xf]
        %v1120 = vld [vmem:[%s14 + $0xc] sm:$0xf]
        %v1121 = vld [vmem:[%s14 + $0x10] sm:$0xf]
        %v1122 = vld [vmem:[%s14 + $0x14] sm:$0xf]
        %v1123 = vld [vmem:[%s14 + $0x18] sm:$0xf]
        %v1124 = vld [vmem:[%s14 + $0x1c] sm:$0xf]
        %v1125 = vld [vmem:[%s14 + $0x20] sm:$0xf]
        %v1126 = vld [vmem:[%s14 + $0x24] sm:$0xf]
        %v1127 = vld [vmem:[%s14 + $0x28] sm:$0xf]
        %v1128 = vld [vmem:[%s14 + $0x2c] sm:$0xf]
        %v1129 = vld [vmem:[%s14 + $0x30] sm:$0xf]
        %v1130 = vld [vmem:[%s14 + $0x34] sm:$0xf]
        %v1131 = vld [vmem:[%s14 + $0x38] sm:$0xf]
        %v1132 = vld [vmem:[%s14 + $0x3c] sm:$0xf]
        %v1133 = vld [vmem:[%s15] sm:$0x1]
        %v1135 = vlaneseq
        %v1136 = vshrl.u32 %v1135, 7
        %v1137 = vsub.s32 0, %v1136
        %v1138 = vrot.slane %v1133, %v1137
        %v1156 = vunpack.c.l.b16 %v1117
        %v1157 = vunpack.c.l.b16 %v1118
        %v1158 = vunpack.c.l.b16 %v1119
        %v1159 = vunpack.c.l.b16 %v1120
        %v1160 = vunpack.c.l.b16 %v1121
        %v1161 = vunpack.c.l.b16 %v1122
        %v1162 = vunpack.c.l.b16 %v1123
        %v1163 = vunpack.c.l.b16 %v1124
        %v1164 = vunpack.c.l.b16 %v1125
        %v1165 = vunpack.c.l.b16 %v1126
        %v1166 = vunpack.c.l.b16 %v1127
        %v1167 = vunpack.c.l.b16 %v1128
        %v1168 = vunpack.c.l.b16 %v1129
        %v1169 = vunpack.c.l.b16 %v1130
        %v1170 = vunpack.c.l.b16 %v1131
        %v1171 = vunpack.c.l.b16 %v1132
        %v1172 = vpack.c.b16 %v1157, %v1156
        %v1173 = vpack.c.b16 %v1159, %v1158
        %v1174 = vpack.c.b16 %v1161, %v1160
        %v1175 = vpack.c.b16 %v1163, %v1162
        %v1176 = vpack.c.b16 %v1165, %v1164
        %v1177 = vpack.c.b16 %v1167, %v1166
        %v1178 = vpack.c.b16 %v1169, %v1168
        %v1179 = vpack.c.b16 %v1171, %v1170
        %1188 = vmatprep.subr.bf16.mxu0 0
        %1189 = vmatpush1.bf16.msra.mxu0 %v1179
        %1190 = vmatprep.subr.bf16.mxu0 0
        %1191 = vmatpush1.bf16.msra.mxu0 %v1178
        %1192 = vmatprep.subr.bf16.mxu0 0
        %1193 = vmatpush1.bf16.msra.mxu0 %v1177
        %1194 = vmatprep.subr.bf16.mxu0 0
        %1195 = vmatpush1.bf16.msra.mxu0 %v1176
        %1196 = vmatprep.subr.bf16.mxu0 0
        %1197 = vmatpush1.bf16.msra.mxu0 %v1175
        %1198 = vmatprep.subr.bf16.mxu0 0
        %1199 = vmatpush1.bf16.msra.mxu0 %v1174
        %1200 = vmatprep.subr.bf16.mxu0 0
        %1201 = vmatpush1.bf16.msra.mxu0 %v1173
        %1202 = vmatprep.subr.bf16.mxu0 0
        %1203 = vmatpush1.bf16.msra.mxu0 %v1172
        %1204 = vmatprep.subr.bf16.mxu0 0
        %1205 = vmatpush2.bf16.msra.mxu0 0
        %1206 = vmatprep.subr.bf16.mxu0 0
        %1207 = vmatpush2.bf16.msra.mxu0 0
        %1208 = vmatprep.subr.bf16.mxu0 0
        %1209 = vmatpush2.bf16.msra.mxu0 0
        %1210 = vmatprep.subr.bf16.mxu0 0
        %1211 = vmatpush2.bf16.msra.mxu0 0
        %1212 = vmatprep.subr.bf16.mxu0 0
        %1213 = vmatpush2.bf16.msra.mxu0 0
        %1214 = vmatprep.subr.bf16.mxu0 0
        %1215 = vmatpush2.bf16.msra.mxu0 0
        %1216 = vmatprep.subr.bf16.mxu0 0
        %1217 = vmatpush2.bf16.msra.mxu0 0
        %1218 = vmatprep.subr.bf16.mxu0 0
        %1219 = vmatpush2.bf16.msra.mxu0 0
        %1220 = vmatprep.mubr.bf16.mxu0 0
        %1221 = vmatmul.mubr.bf16.gmra.mxu0 %v1116
        %v1222 = vpop.f32.mrf.mxu0
        %v1223 = vadd.f32 %v1138, %v1222
        %v1224 = vpop.f32.mrf.mxu0
        %v1225 = vpop.f32.mrf.mxu0
        %v1226 = vadd.f32 %v1138, %v1225
        %v1227 = vpop.f32.mrf.mxu0
        %1228 = vdwg.mxu0
        %v1229 = vmul.f32 %v1223, %v1223
        %v1230 = vmul.f32 %v1226, %v1226
        %v1231 = vmul.f32 %v1223, %v1229
        %v1232 = vmul.f32 %v1226, %v1230
        %v1233 = vmul.f32 %v1231, 0.044715
        %v1234 = vmul.f32 %v1232, 0.044715
        %v1235 = vadd.f32 %v1223, %v1233
        %v1236 = vadd.f32 %v1226, %v1234
        %v1237 = vmul.f32 %v1235, 0.7978846
        %v1238 = vmul.f32 %v1236, 0.7978846
        %v1239 = vtanh.pop %v1237
        %v1240 = vtanh.pop %v1238
        %v1241 = vadd.f32 %v1239, 1.0
        %v1242 = vadd.f32 %v1240, 1.0
        %v1243 = vmul.f32 %v1241, 0.5
        %v1244 = vmul.f32 %v1242, 0.5
        %v1245 = vmul.f32 %v1223, %v1243
        %v1246 = vmul.f32 %v1226, %v1244
        %v1247 = vpack.c.bf16 %v1246, %v1245
        %v1248 = vld [vmem:[%s16] sm:$0xf]
        %v1249 = vld [vmem:[%s16 + $0x4] sm:$0xf]
        %v1250 = vld [vmem:[%s16 + $0x8] sm:$0xf]
        %v1251 = vld [vmem:[%s16 + $0xc] sm:$0xf]
        %v1252 = vld [vmem:[%s16 + $0x10] sm:$0xf]
        %v1253 = vld [vmem:[%s16 + $0x14] sm:$0xf]
        %v1254 = vld [vmem:[%s16 + $0x18] sm:$0xf]
        %v1255 = vld [vmem:[%s16 + $0x1c] sm:$0xf]
        %v1256 = vld [vmem:[%s16 + $0x20] sm:$0xf]
        %v1257 = vld [vmem:[%s16 + $0x24] sm:$0xf]
        %v1258 = vld [vmem:[%s16 + $0x28] sm:$0xf]
        %v1259 = vld [vmem:[%s16 + $0x2c] sm:$0xf]
        %v1260 = vld [vmem:[%s16 + $0x30] sm:$0xf]
        %v1261 = vld [vmem:[%s16 + $0x34] sm:$0xf]
        %v1262 = vld [vmem:[%s16 + $0x38] sm:$0xf]
        %v1263 = vld [vmem:[%s16 + $0x3c] sm:$0xf]
        %v1264 = vld [vmem:[%s17] sm:$0x1]
        %v1266 = vlaneseq
        %v1267 = vshrl.u32 %v1266, 7
        %v1268 = vsub.s32 0, %v1267
        %v1269 = vrot.slane %v1264, %v1268
        %v1287 = vunpack.c.l.b16 %v1248
        %v1288 = vunpack.c.l.b16 %v1249
        %v1289 = vunpack.c.l.b16 %v1250
        %v1290 = vunpack.c.l.b16 %v1251
        %v1291 = vunpack.c.l.b16 %v1252
        %v1292 = vunpack.c.l.b16 %v1253
        %v1293 = vunpack.c.l.b16 %v1254
        %v1294 = vunpack.c.l.b16 %v1255
        %v1295 = vunpack.c.l.b16 %v1256
        %v1296 = vunpack.c.l.b16 %v1257
        %v1297 = vunpack.c.l.b16 %v1258
        %v1298 = vunpack.c.l.b16 %v1259
        %v1299 = vunpack.c.l.b16 %v1260
        %v1300 = vunpack.c.l.b16 %v1261
        %v1301 = vunpack.c.l.b16 %v1262
        %v1302 = vunpack.c.l.b16 %v1263
        %v1303 = vpack.c.b16 %v1288, %v1287
        %v1304 = vpack.c.b16 %v1290, %v1289
        %v1305 = vpack.c.b16 %v1292, %v1291
        %v1306 = vpack.c.b16 %v1294, %v1293
        %v1307 = vpack.c.b16 %v1296, %v1295
        %v1308 = vpack.c.b16 %v1298, %v1297
        %v1309 = vpack.c.b16 %v1300, %v1299
        %v1310 = vpack.c.b16 %v1302, %v1301
        %1319 = vmatprep.subr.bf16.mxu0 0
        %1320 = vmatpush1.bf16.msra.mxu0 %v1310
        %1321 = vmatprep.subr.bf16.mxu0 0
        %1322 = vmatpush1.bf16.msra.mxu0 %v1309
        %1323 = vmatprep.subr.bf16.mxu0 0
        %1324 = vmatpush1.bf16.msra.mxu0 %v1308
        %1325 = vmatprep.subr.bf16.mxu0 0
        %1326 = vmatpush1.bf16.msra.mxu0 %v1307
        %1327 = vmatprep.subr.bf16.mxu0 0
        %1328 = vmatpush1.bf16.msra.mxu0 %v1306
        %1329 = vmatprep.subr.bf16.mxu0 0
        %1330 = vmatpush1.bf16.msra.mxu0 %v1305
        %1331 = vmatprep.subr.bf16.mxu0 0
        %1332 = vmatpush1.bf16.msra.mxu0 %v1304
        %1333 = vmatprep.subr.bf16.mxu0 0
        %1334 = vmatpush1.bf16.msra.mxu0 %v1303
        %1335 = vmatprep.subr.bf16.mxu0 0
        %1336 = vmatpush2.bf16.msra.mxu0 0
        %1337 = vmatprep.subr.bf16.mxu0 0
        %1338 = vmatpush2.bf16.msra.mxu0 0
        %1339 = vmatprep.subr.bf16.mxu0 0
        %1340 = vmatpush2.bf16.msra.mxu0 0
        %1341 = vmatprep.subr.bf16.mxu0 0
        %1342 = vmatpush2.bf16.msra.mxu0 0
        %1343 = vmatprep.subr.bf16.mxu0 0
        %1344 = vmatpush2.bf16.msra.mxu0 0
        %1345 = vmatprep.subr.bf16.mxu0 0
        %1346 = vmatpush2.bf16.msra.mxu0 0
        %1347 = vmatprep.subr.bf16.mxu0 0
        %1348 = vmatpush2.bf16.msra.mxu0 0
        %1349 = vmatprep.subr.bf16.mxu0 0
        %1350 = vmatpush2.bf16.msra.mxu0 0
        %1351 = vmatprep.mubr.bf16.mxu0 0
        %1352 = vmatmul.mubr.bf16.gmra.mxu0 %v1247
        %v1353 = vpop.f32.mrf.mxu0
        %v1354 = vadd.f32 %v1269, %v1353
        %v1355 = vpop.f32.mrf.mxu0
        %v1356 = vpop.f32.mrf.mxu0
        %v1357 = vadd.f32 %v1269, %v1356
        %v1358 = vpop.f32.mrf.mxu0
        %1359 = vdwg.mxu0
        %1360 = vst [vmem:[%s635] sm:$0xff] %v1354
        %1361 = vst [vmem:[%s635 + $0x8] sm:$0xff] %v1357
        %s1362 = sand.u32 %s451, 1
        %s1363 = scalar_lea.sflag [#allocation3], %s1362
        %s1364 = sand.u32 %s451, 1
        %s1365 = smul.addr %s1364, 16
        %s1366 = scalar_lea.vmem [#allocation2], %s1365
        // Predicated region
        $region93: #{mae_forward.1} parent=91 // pred_check
          %p1367 = pneg %p461
        $region94: #{mae_forward.1} parent=91 // pred_check_branch
          %1369 = sbr.rel (%p1367) target = $region96
        $region95: #{mae_forward.1} parent=91 // pred_region
          %s1370 = smul.u32 2, %s37
          %s1372 = ssub.s32 256, 256
          %1373 = vsyncadd %s1363, %s1372
          %s1374 = smul.addr %s36, 2
          %s1375 = sadd.s32 %s1370, %s1374
          %s1376 = smul.addr %s1375, 128
          %s1377 = scalar_lea.hbm %s18, %s1376
          %s1378 = sshll.u32 %s1366, 4
          %s1379 = int_to_ptr.vmem [resolvable:$true] %s1378
          %1384 = dma.vmem_to_hbm [thread:$0]  %s1379, 256, %s1377, %s1363, 128, 128, 8
        $region96: #{mae_forward.1} parent=91 // pred_fallthru
          _
      $region92: #{mae_forward.1} parent=5 // pred_fallthru
        _
      %p1385 = scmp.le.s32.totalorder 2, %s27
      // Predicated region
      $region97: #{mae_forward.1} parent=5 // pred_check
        %p1386 = pneg %p1385
      $region98: #{mae_forward.1} parent=5 // pred_check_branch
        %1388 = sbr.rel (%p1386) target = $region100
      $region99: #{mae_forward.1} parent=5 // pred_region
        %s1389 = ssub.s32 %s27, 2
        // Predicated region
        $region101: #{mae_forward.1} parent=99 // pred_check
          %p1390 = pneg %p467
        $region102: #{mae_forward.1} parent=99 // pred_check_branch
          %1392 = sbr.rel (%p1390) target = $region104
        $region103: #{mae_forward.1} parent=99 // pred_region
          %s1393 = sand.u32 %s452, 1
          %s1394 = scalar_lea.sflag [#allocation3], %s1393
          %s1395 = sand.u32 %s452, 1
          %s1396 = smul.addr %s1395, 16
          %s1397 = scalar_lea.vmem [#allocation2], %s1396
          %1398 = dma.done %s1394, 256
        $region104: #{mae_forward.1} parent=99 // pred_fallthru
          _
      $region100: #{mae_forward.1} parent=5 // pred_fallthru
        _
    $region6: #{mae_forward.1} parent=1 // loop_footer
      %s31 = sadd.s32 1, %s27
    $region7: #{mae_forward.1} parent=1 // loop_footer_branch
      %26 = sbr.rel target = $region3
    $region8: #{mae_forward.1} parent=1 // loop_exit
      _
    %1399 = vsyncpa [#allocation3], 1
    %s1400 = scalar_lea.sflag [#allocation3], 1
    %1401 = vsyncpa %s1400, 1

</llo_original>
